<compile_context>
chip_gen: v7x
topology: tpu7x:2x2x1
jax: 0.10.0
libtpu: 0.0.40
codegen_flags: <defaults>
</compile_context>

<pallas_src>
import jax
import jax.numpy as jnp
from jax import lax
from jax.experimental import pallas as pl
from jax.experimental.pallas import tpu as pltpu

HIDDEN = 32
HIDDEN_PAD = 128          # lane-dense padded hidden width (f32 lane tile)
INPUT_SIZE = 1
OUTPUT_SIZE = 1
NUM_LAYERS = 2            # hard-coded topology (layer0 + layer1), matching RNN1


def _rnn_recurrence_kernel(pre0_ref,    # (S, Bp, Hp): x_t @ W_ih0^T + b_ih0 + b_hh0 (time-major, lane-padded)
                           wh0_ref,     # (Hp, Hp)   : W_hh_l0^T, zero-padded
                           wih1_ref,    # (Hp, Hp)   : W_ih_l1^T, zero-padded
                           whh1_ref,    # (Hp, Hp)   : W_hh_l1^T, zero-padded
                           b1_ref,      # (1, Hp)    : b_ih_l1 + b_hh_l1, zero-padded
                           h2_ref):     # (S, Bp, Hp) output: layer-1 hidden states
    S, Bp, Hp = pre0_ref.shape

    # Hoist loop-invariant loads: weights/bias live in vregs across all steps.
    wh0 = wh0_ref[...]
    wih1 = wih1_ref[...]
    whh1 = whh1_ref[...]
    b1 = b1_ref[...]

    def step(t, carry):
        h1, h2 = carry
        # Layer 0: only the recurrent matmul sits on the serial chain; the
        # input projection and both layer-0 biases were hoisted into pre0.
        h1 = jnp.tanh(
            pre0_ref[t]
            + jnp.dot(h1, wh0, preferred_element_type=jnp.float32))
        # Layer 1: two dots summed (v7x MRB accumulates in place); both
        # operands stay in vregs -- no VMEM staging.
        h2 = jnp.tanh(
            jnp.dot(h1, wih1, preferred_element_type=jnp.float32)
            + jnp.dot(h2, whh1, preferred_element_type=jnp.float32)
            + b1)
        h2_ref[t] = h2            # unmasked 128-lane store (fc head is outside)
        return (h1, h2)

    zeros = jnp.zeros((Bp, Hp), jnp.float32)   # h0 = zeros in RNN1.forward
    unroll = True if S <= 16 else 8            # bounded unroll for long S
    lax.fori_loop(0, S, step, (zeros, zeros), unroll=unroll)


def _pad_to(x, rows, cols):
    """Zero-pad a 2-D array to (rows, cols)."""
    r, c = x.shape
    return jnp.pad(x, ((0, rows - r), (0, cols - c)))


def init_params(key, input_size=INPUT_SIZE, hidden=HIDDEN, output=OUTPUT_SIZE):
    """Deterministic init mimicking PyTorch's U(-1/sqrt(H), 1/sqrt(H))."""
    ks = jax.random.split(key, 10)
    kh = 1.0 / jnp.sqrt(jnp.float32(hidden))
    u = lambda k, shape, s: jax.random.uniform(k, shape, jnp.float32, -s, s)
    return dict(
        w_ih_l0=u(ks[0], (hidden, input_size), kh),
        w_hh_l0=u(ks[1], (hidden, hidden), kh),
        b_ih_l0=u(ks[2], (hidden,), kh),
        b_hh_l0=u(ks[3], (hidden,), kh),
        w_ih_l1=u(ks[4], (hidden, hidden), kh),
        w_hh_l1=u(ks[5], (hidden, hidden), kh),
        b_ih_l1=u(ks[6], (hidden,), kh),
        b_hh_l1=u(ks[7], (hidden,), kh),
        w_fc=u(ks[8], (output, hidden), kh),
        b_fc=u(ks[9], (output,), kh),
    )


@jax.jit
def rnn1_forward(x, params):
    """x: (B, S, I) float32 -> (B, S, O) float32 (PyTorch batch_first semantics)."""
    B, S, I = x.shape
    H = params["w_hh_l0"].shape[0]
    Hp = HIDDEN_PAD
    Bp = ((B + 7) // 8) * 8              # pad batch to the f32 sublane tile

    # Time-major, batch-padded input (padded batch rows are independent of the
    # real rows and sliced off after the kernel).
    x_tm = jnp.transpose(x, (1, 0, 2)).astype(jnp.float32)        # (S, B, I)
    if Bp != B:
        x_tm = jnp.pad(x_tm, ((0, 0), (0, Bp - B), (0, 0)))       # (S, Bp, I)

    # Hoisted layer-0 input projection + both layer-0 biases.  I == 1, so this
    # is a pure broadcast multiply (no degenerate K=1 MXU contraction).
    b0 = params["b_ih_l0"] + params["b_hh_l0"]                    # (H,)
    pre0 = x_tm[..., 0:1] * params["w_ih_l0"][:, 0] + b0          # (S, Bp, H)
    # Lane-pad to Hp with exact zeros (tanh(0)=0 keeps pad lanes inert).
    pre0 = jnp.pad(pre0, ((0, 0), (0, 0), (0, Hp - H)))           # (S, Bp, Hp)

    wh0 = _pad_to(params["w_hh_l0"].T, Hp, Hp)                    # (Hp, Hp)
    wih1 = _pad_to(params["w_ih_l1"].T, Hp, Hp)                   # (Hp, Hp)
    whh1 = _pad_to(params["w_hh_l1"].T, Hp, Hp)                   # (Hp, Hp)
    b1 = _pad_to((params["b_ih_l1"] + params["b_hh_l1"]).reshape(1, H), 1, Hp)

    vmem = pl.BlockSpec(memory_space=pltpu.MemorySpace.VMEM)
    h2_all = pl.pallas_call(
        _rnn_recurrence_kernel,
        out_shape=jax.ShapeDtypeStruct((S, Bp, Hp), jnp.float32),
        in_specs=[vmem] * 5,
        out_specs=vmem,
    )(pre0, wh0, wih1, whh1, b1)

    # fc head hoisted out of the recurrence and fused with the
    # time-major -> batch-first transpose in one contraction.
    h2_all = h2_all[:, :B, :H]                                    # (S, B, H)
    out = jnp.einsum("sbh,oh->bso", h2_all, params["w_fc"]) + params["b_fc"]
    return out


def _reference_forward(x, params):
    """Pure-JAX reference (matches torch.nn.RNN + Linear semantics)."""
    B, S, I = x.shape
    H = params["w_hh_l0"].shape[0]

    def step(carry, x_t):
        h1, h2 = carry
        h1 = jnp.tanh(x_t @ params["w_ih_l0"].T + params["b_ih_l0"]
                      + h1 @ params["w_hh_l0"].T + params["b_hh_l0"])
        h2 = jnp.tanh(h1 @ params["w_ih_l1"].T + params["b_ih_l1"]
                      + h2 @ params["w_hh_l1"].T + params["b_hh_l1"])
        y = h2 @ params["w_fc"].T + params["b_fc"]
        return (h1, h2), y

    h0 = (jnp.zeros((B, H), jnp.float32), jnp.zeros((B, H), jnp.float32))
    _, ys = lax.scan(step, h0, jnp.transpose(x, (1, 0, 2)))
    return jnp.transpose(ys, (1, 0, 2))


if __name__ == "__main__":
    key = jax.random.PRNGKey(0)
    k_param, k_x = jax.random.split(key)

    B, S = 2, 8
    x = jax.random.normal(k_x, (B, S, INPUT_SIZE), jnp.float32)
    params = init_params(k_param)

    out = jax.block_until_ready(rnn1_forward(x, params))
    ref = _reference_forward(x, params)

    assert out.shape == (B, S, OUTPUT_SIZE)
    assert jnp.allclose(out, ref, atol=1e-5, rtol=1e-5), "mismatch vs reference"

    print("KERNEL_OK")
</pallas_src>

<mosaic_0001>
module attributes {stable_mosaic.version = 11 : i64} {
  func.func @_rnn_recurrence_kernel(%arg0: memref<8x8x128xf32, #tpu.memory_space<vmem>>, %arg1: memref<128x128xf32, #tpu.memory_space<vmem>>, %arg2: memref<128x128xf32, #tpu.memory_space<vmem>>, %arg3: memref<128x128xf32, #tpu.memory_space<vmem>>, %arg4: memref<1x128xf32, #tpu.memory_space<vmem>>, %arg5: memref<8x8x128xf32, #tpu.memory_space<vmem>>) attributes {dimension_semantics = [], scalar_prefetch = 0 : i64, scratch_operands = 0 : i64, tpu.core_type = #tpu.core_type<tc>} {
    %c0 = arith.constant 0 : index
    %c0_0 = arith.constant 0 : index
    %0 = vector.load %arg1[%c0, %c0_0] : memref<128x128xf32, #tpu.memory_space<vmem>>, vector<128x128xf32>
    %c0_1 = arith.constant 0 : index
    %c0_2 = arith.constant 0 : index
    %1 = vector.load %arg2[%c0_1, %c0_2] : memref<128x128xf32, #tpu.memory_space<vmem>>, vector<128x128xf32>
    %c0_3 = arith.constant 0 : index
    %c0_4 = arith.constant 0 : index
    %2 = vector.load %arg3[%c0_3, %c0_4] : memref<128x128xf32, #tpu.memory_space<vmem>>, vector<128x128xf32>
    %c0_5 = arith.constant 0 : index
    %c0_6 = arith.constant 0 : index
    %3 = vector.load %arg4[%c0_5, %c0_6] : memref<1x128xf32, #tpu.memory_space<vmem>>, vector<1x128xf32>
    %cst = arith.constant 0.000000e+00 : f32
    %4 = vector.broadcast %cst : f32 to vector<8x128xf32>
    %c0_i32 = arith.constant 0 : i32
    %5 = arith.index_cast %c0_i32 : i32 to index
    %c0_7 = arith.constant 0 : index
    %c0_8 = arith.constant 0 : index
    %6 = vector.load %arg0[%5, %c0_7, %c0_8] : memref<8x8x128xf32, #tpu.memory_space<vmem>>, vector<1x8x128xf32>
    %7 = vector.shape_cast %6 : vector<1x8x128xf32> to vector<8x128xf32>
    %cst_9 = arith.constant dense<0.000000e+00> : vector<8x128xf32>
    %8 = tpu.matmul %4, %0, %cst_9 {dimension_numbers = #tpu.dot_dimension_numbers<[1], [0], [0], [1], [0, 0, 1, 1], [], []>} : vector<8x128xf32>, vector<128x128xf32>, vector<8x128xf32> -> vector<8x128xf32>
    %9 = arith.addf %7, %8 : vector<8x128xf32>
    %10 = math.tanh %9 : vector<8x128xf32>
    %cst_10 = arith.constant dense<0.000000e+00> : vector<8x128xf32>
    %11 = tpu.matmul %10, %1, %cst_10 {dimension_numbers = #tpu.dot_dimension_numbers<[1], [0], [0], [1], [0, 0, 1, 1], [], []>} : vector<8x128xf32>, vector<128x128xf32>, vector<8x128xf32> -> vector<8x128xf32>
    %cst_11 = arith.constant dense<0.000000e+00> : vector<8x128xf32>
    %12 = tpu.matmul %4, %2, %cst_11 {dimension_numbers = #tpu.dot_dimension_numbers<[1], [0], [0], [1], [0, 0, 1, 1], [], []>} : vector<8x128xf32>, vector<128x128xf32>, vector<8x128xf32> -> vector<8x128xf32>
    %13 = arith.addf %11, %12 : vector<8x128xf32>
    %14 = vector.broadcast %3 : vector<1x128xf32> to vector<8x128xf32>
    %15 = arith.addf %13, %14 : vector<8x128xf32>
    %16 = math.tanh %15 : vector<8x128xf32>
    %17 = arith.index_cast %c0_i32 : i32 to index
    %c0_12 = arith.constant 0 : index
    %c0_13 = arith.constant 0 : index
    %18 = vector.load %arg5[%17, %c0_12, %c0_13] : memref<8x8x128xf32, #tpu.memory_space<vmem>>, vector<1x8x128xf32>
    %19 = vector.shape_cast %18 : vector<1x8x128xf32> to vector<8x128xf32>
    %20 = vector.shape_cast %16 : vector<8x128xf32> to vector<1x8x128xf32>
    tpu.vector_store %arg5[%17, %c0_12, %c0_13], %20 {strides = array<i32>} : memref<8x8x128xf32, #tpu.memory_space<vmem>>, vector<1x8x128xf32>,
    %c1_i32 = arith.constant 1 : i32
    %21 = arith.index_cast %c1_i32 : i32 to index
    %c0_14 = arith.constant 0 : index
    %c0_15 = arith.constant 0 : index
    %22 = vector.load %arg0[%21, %c0_14, %c0_15] : memref<8x8x128xf32, #tpu.memory_space<vmem>>, vector<1x8x128xf32>
    %23 = vector.shape_cast %22 : vector<1x8x128xf32> to vector<8x128xf32>
    %cst_16 = arith.constant dense<0.000000e+00> : vector<8x128xf32>
    %24 = tpu.matmul %10, %0, %cst_16 {dimension_numbers = #tpu.dot_dimension_numbers<[1], [0], [0], [1], [0, 0, 1, 1], [], []>} : vector<8x128xf32>, vector<128x128xf32>, vector<8x128xf32> -> vector<8x128xf32>
    %25 = arith.addf %23, %24 : vector<8x128xf32>
    %26 = math.tanh %25 : vector<8x128xf32>
    %cst_17 = arith.constant dense<0.000000e+00> : vector<8x128xf32>
    %27 = tpu.matmul %26, %1, %cst_17 {dimension_numbers = #tpu.dot_dimension_numbers<[1], [0], [0], [1], [0, 0, 1, 1], [], []>} : vector<8x128xf32>, vector<128x128xf32>, vector<8x128xf32> -> vector<8x128xf32>
    %cst_18 = arith.constant dense<0.000000e+00> : vector<8x128xf32>
    %28 = tpu.matmul %16, %2, %cst_18 {dimension_numbers = #tpu.dot_dimension_numbers<[1], [0], [0], [1], [0, 0, 1, 1], [], []>} : vector<8x128xf32>, vector<128x128xf32>, vector<8x128xf32> -> vector<8x128xf32>
    %29 = arith.addf %27, %28 : vector<8x128xf32>
    %30 = vector.broadcast %3 : vector<1x128xf32> to vector<8x128xf32>
    %31 = arith.addf %29, %30 : vector<8x128xf32>
    %32 = math.tanh %31 : vector<8x128xf32>
    %33 = arith.index_cast %c1_i32 : i32 to index
    %c0_19 = arith.constant 0 : index
    %c0_20 = arith.constant 0 : index
    %34 = vector.load %arg5[%33, %c0_19, %c0_20] : memref<8x8x128xf32, #tpu.memory_space<vmem>>, vector<1x8x128xf32>
    %35 = vector.shape_cast %34 : vector<1x8x128xf32> to vector<8x128xf32>
    %36 = vector.shape_cast %32 : vector<8x128xf32> to vector<1x8x128xf32>
    tpu.vector_store %arg5[%33, %c0_19, %c0_20], %36 {strides = array<i32>} : memref<8x8x128xf32, #tpu.memory_space<vmem>>, vector<1x8x128xf32>,
    %c2_i32 = arith.constant 2 : i32
    %37 = arith.index_cast %c2_i32 : i32 to index
    %c0_21 = arith.constant 0 : index
    %c0_22 = arith.constant 0 : index
    %38 = vector.load %arg0[%37, %c0_21, %c0_22] : memref<8x8x128xf32, #tpu.memory_space<vmem>>, vector<1x8x128xf32>
    %39 = vector.shape_cast %38 : vector<1x8x128xf32> to vector<8x128xf32>
    %cst_23 = arith.constant dense<0.000000e+00> : vector<8x128xf32>
    %40 = tpu.matmul %26, %0, %cst_23 {dimension_numbers = #tpu.dot_dimension_numbers<[1], [0], [0], [1], [0, 0, 1, 1], [], []>} : vector<8x128xf32>, vector<128x128xf32>, vector<8x128xf32> -> vector<8x128xf32>
    %41 = arith.addf %39, %40 : vector<8x128xf32>
    %42 = math.tanh %41 : vector<8x128xf32>
    %cst_24 = arith.constant dense<0.000000e+00> : vector<8x128xf32>
    %43 = tpu.matmul %42, %1, %cst_24 {dimension_numbers = #tpu.dot_dimension_numbers<[1], [0], [0], [1], [0, 0, 1, 1], [], []>} : vector<8x128xf32>, vector<128x128xf32>, vector<8x128xf32> -> vector<8x128xf32>
    %cst_25 = arith.constant dense<0.000000e+00> : vector<8x128xf32>
    %44 = tpu.matmul %32, %2, %cst_25 {dimension_numbers = #tpu.dot_dimension_numbers<[1], [0], [0], [1], [0, 0, 1, 1], [], []>} : vector<8x128xf32>, vector<128x128xf32>, vector<8x128xf32> -> vector<8x128xf32>
    %45 = arith.addf %43, %44 : vector<8x128xf32>
    %46 = vector.broadcast %3 : vector<1x128xf32> to vector<8x128xf32>
    %47 = arith.addf %45, %46 : vector<8x128xf32>
    %48 = math.tanh %47 : vector<8x128xf32>
    %49 = arith.index_cast %c2_i32 : i32 to index
    %c0_26 = arith.constant 0 : index
    %c0_27 = arith.constant 0 : index
    %50 = vector.load %arg5[%49, %c0_26, %c0_27] : memref<8x8x128xf32, #tpu.memory_space<vmem>>, vector<1x8x128xf32>
    %51 = vector.shape_cast %50 : vector<1x8x128xf32> to vector<8x128xf32>
    %52 = vector.shape_cast %48 : vector<8x128xf32> to vector<1x8x128xf32>
    tpu.vector_store %arg5[%49, %c0_26, %c0_27], %52 {strides = array<i32>} : memref<8x8x128xf32, #tpu.memory_space<vmem>>, vector<1x8x128xf32>,
    %c3_i32 = arith.constant 3 : i32
    %53 = arith.index_cast %c3_i32 : i32 to index
    %c0_28 = arith.constant 0 : index
    %c0_29 = arith.constant 0 : index
    %54 = vector.load %arg0[%53, %c0_28, %c0_29] : memref<8x8x128xf32, #tpu.memory_space<vmem>>, vector<1x8x128xf32>
    %55 = vector.shape_cast %54 : vector<1x8x128xf32> to vector<8x128xf32>
    %cst_30 = arith.constant dense<0.000000e+00> : vector<8x128xf32>
    %56 = tpu.matmul %42, %0, %cst_30 {dimension_numbers = #tpu.dot_dimension_numbers<[1], [0], [0], [1], [0, 0, 1, 1], [], []>} : vector<8x128xf32>, vector<128x128xf32>, vector<8x128xf32> -> vector<8x128xf32>
    %57 = arith.addf %55, %56 : vector<8x128xf32>
    %58 = math.tanh %57 : vector<8x128xf32>
    %cst_31 = arith.constant dense<0.000000e+00> : vector<8x128xf32>
    %59 = tpu.matmul %58, %1, %cst_31 {dimension_numbers = #tpu.dot_dimension_numbers<[1], [0], [0], [1], [0, 0, 1, 1], [], []>} : vector<8x128xf32>, vector<128x128xf32>, vector<8x128xf32> -> vector<8x128xf32>
    %cst_32 = arith.constant dense<0.000000e+00> : vector<8x128xf32>
    %60 = tpu.matmul %48, %2, %cst_32 {dimension_numbers = #tpu.dot_dimension_numbers<[1], [0], [0], [1], [0, 0, 1, 1], [], []>} : vector<8x128xf32>, vector<128x128xf32>, vector<8x128xf32> -> vector<8x128xf32>
    %61 = arith.addf %59, %60 : vector<8x128xf32>
    %62 = vector.broadcast %3 : vector<1x128xf32> to vector<8x128xf32>
    %63 = arith.addf %61, %62 : vector<8x128xf32>
    %64 = math.tanh %63 : vector<8x128xf32>
    %65 = arith.index_cast %c3_i32 : i32 to index
    %c0_33 = arith.constant 0 : index
    %c0_34 = arith.constant 0 : index
    %66 = vector.load %arg5[%65, %c0_33, %c0_34] : memref<8x8x128xf32, #tpu.memory_space<vmem>>, vector<1x8x128xf32>
    %67 = vector.shape_cast %66 : vector<1x8x128xf32> to vector<8x128xf32>
    %68 = vector.shape_cast %64 : vector<8x128xf32> to vector<1x8x128xf32>
    tpu.vector_store %arg5[%65, %c0_33, %c0_34], %68 {strides = array<i32>} : memref<8x8x128xf32, #tpu.memory_space<vmem>>, vector<1x8x128xf32>,
    %c4_i32 = arith.constant 4 : i32
    %69 = arith.index_cast %c4_i32 : i32 to index
    %c0_35 = arith.constant 0 : index
    %c0_36 = arith.constant 0 : index
    %70 = vector.load %arg0[%69, %c0_35, %c0_36] : memref<8x8x128xf32, #tpu.memory_space<vmem>>, vector<1x8x128xf32>
    %71 = vector.shape_cast %70 : vector<1x8x128xf32> to vector<8x128xf32>
    %cst_37 = arith.constant dense<0.000000e+00> : vector<8x128xf32>
    %72 = tpu.matmul %58, %0, %cst_37 {dimension_numbers = #tpu.dot_dimension_numbers<[1], [0], [0], [1], [0, 0, 1, 1], [], []>} : vector<8x128xf32>, vector<128x128xf32>, vector<8x128xf32> -> vector<8x128xf32>
    %73 = arith.addf %71, %72 : vector<8x128xf32>
    %74 = math.tanh %73 : vector<8x128xf32>
    %cst_38 = arith.constant dense<0.000000e+00> : vector<8x128xf32>
    %75 = tpu.matmul %74, %1, %cst_38 {dimension_numbers = #tpu.dot_dimension_numbers<[1], [0], [0], [1], [0, 0, 1, 1], [], []>} : vector<8x128xf32>, vector<128x128xf32>, vector<8x128xf32> -> vector<8x128xf32>
    %cst_39 = arith.constant dense<0.000000e+00> : vector<8x128xf32>
    %76 = tpu.matmul %64, %2, %cst_39 {dimension_numbers = #tpu.dot_dimension_numbers<[1], [0], [0], [1], [0, 0, 1, 1], [], []>} : vector<8x128xf32>, vector<128x128xf32>, vector<8x128xf32> -> vector<8x128xf32>
    %77 = arith.addf %75, %76 : vector<8x128xf32>
    %78 = vector.broadcast %3 : vector<1x128xf32> to vector<8x128xf32>
    %79 = arith.addf %77, %78 : vector<8x128xf32>
    %80 = math.tanh %79 : vector<8x128xf32>
    %81 = arith.index_cast %c4_i32 : i32 to index
    %c0_40 = arith.constant 0 : index
    %c0_41 = arith.constant 0 : index
    %82 = vector.load %arg5[%81, %c0_40, %c0_41] : memref<8x8x128xf32, #tpu.memory_space<vmem>>, vector<1x8x128xf32>
    %83 = vector.shape_cast %82 : vector<1x8x128xf32> to vector<8x128xf32>
    %84 = vector.shape_cast %80 : vector<8x128xf32> to vector<1x8x128xf32>
    tpu.vector_store %arg5[%81, %c0_40, %c0_41], %84 {strides = array<i32>} : memref<8x8x128xf32, #tpu.memory_space<vmem>>, vector<1x8x128xf32>,
    %c5_i32 = arith.constant 5 : i32
    %85 = arith.index_cast %c5_i32 : i32 to index
    %c0_42 = arith.constant 0 : index
    %c0_43 = arith.constant 0 : index
    %86 = vector.load %arg0[%85, %c0_42, %c0_43] : memref<8x8x128xf32, #tpu.memory_space<vmem>>, vector<1x8x128xf32>
    %87 = vector.shape_cast %86 : vector<1x8x128xf32> to vector<8x128xf32>
    %cst_44 = arith.constant dense<0.000000e+00> : vector<8x128xf32>
    %88 = tpu.matmul %74, %0, %cst_44 {dimension_numbers = #tpu.dot_dimension_numbers<[1], [0], [0], [1], [0, 0, 1, 1], [], []>} : vector<8x128xf32>, vector<128x128xf32>, vector<8x128xf32> -> vector<8x128xf32>
    %89 = arith.addf %87, %88 : vector<8x128xf32>
    %90 = math.tanh %89 : vector<8x128xf32>
    %cst_45 = arith.constant dense<0.000000e+00> : vector<8x128xf32>
    %91 = tpu.matmul %90, %1, %cst_45 {dimension_numbers = #tpu.dot_dimension_numbers<[1], [0], [0], [1], [0, 0, 1, 1], [], []>} : vector<8x128xf32>, vector<128x128xf32>, vector<8x128xf32> -> vector<8x128xf32>
    %cst_46 = arith.constant dense<0.000000e+00> : vector<8x128xf32>
    %92 = tpu.matmul %80, %2, %cst_46 {dimension_numbers = #tpu.dot_dimension_numbers<[1], [0], [0], [1], [0, 0, 1, 1], [], []>} : vector<8x128xf32>, vector<128x128xf32>, vector<8x128xf32> -> vector<8x128xf32>
    %93 = arith.addf %91, %92 : vector<8x128xf32>
    %94 = vector.broadcast %3 : vector<1x128xf32> to vector<8x128xf32>
    %95 = arith.addf %93, %94 : vector<8x128xf32>
    %96 = math.tanh %95 : vector<8x128xf32>
    %97 = arith.index_cast %c5_i32 : i32 to index
    %c0_47 = arith.constant 0 : index
    %c0_48 = arith.constant 0 : index
    %98 = vector.load %arg5[%97, %c0_47, %c0_48] : memref<8x8x128xf32, #tpu.memory_space<vmem>>, vector<1x8x128xf32>
    %99 = vector.shape_cast %98 : vector<1x8x128xf32> to vector<8x128xf32>
    %100 = vector.shape_cast %96 : vector<8x128xf32> to vector<1x8x128xf32>
    tpu.vector_store %arg5[%97, %c0_47, %c0_48], %100 {strides = array<i32>} : memref<8x8x128xf32, #tpu.memory_space<vmem>>, vector<1x8x128xf32>,
    %c6_i32 = arith.constant 6 : i32
    %101 = arith.index_cast %c6_i32 : i32 to index
    %c0_49 = arith.constant 0 : index
    %c0_50 = arith.constant 0 : index
    %102 = vector.load %arg0[%101, %c0_49, %c0_50] : memref<8x8x128xf32, #tpu.memory_space<vmem>>, vector<1x8x128xf32>
    %103 = vector.shape_cast %102 : vector<1x8x128xf32> to vector<8x128xf32>
    %cst_51 = arith.constant dense<0.000000e+00> : vector<8x128xf32>
    %104 = tpu.matmul %90, %0, %cst_51 {dimension_numbers = #tpu.dot_dimension_numbers<[1], [0], [0], [1], [0, 0, 1, 1], [], []>} : vector<8x128xf32>, vector<128x128xf32>, vector<8x128xf32> -> vector<8x128xf32>
    %105 = arith.addf %103, %104 : vector<8x128xf32>
    %106 = math.tanh %105 : vector<8x128xf32>
    %cst_52 = arith.constant dense<0.000000e+00> : vector<8x128xf32>
    %107 = tpu.matmul %106, %1, %cst_52 {dimension_numbers = #tpu.dot_dimension_numbers<[1], [0], [0], [1], [0, 0, 1, 1], [], []>} : vector<8x128xf32>, vector<128x128xf32>, vector<8x128xf32> -> vector<8x128xf32>
    %cst_53 = arith.constant dense<0.000000e+00> : vector<8x128xf32>
    %108 = tpu.matmul %96, %2, %cst_53 {dimension_numbers = #tpu.dot_dimension_numbers<[1], [0], [0], [1], [0, 0, 1, 1], [], []>} : vector<8x128xf32>, vector<128x128xf32>, vector<8x128xf32> -> vector<8x128xf32>
    %109 = arith.addf %107, %108 : vector<8x128xf32>
    %110 = vector.broadcast %3 : vector<1x128xf32> to vector<8x128xf32>
    %111 = arith.addf %109, %110 : vector<8x128xf32>
    %112 = math.tanh %111 : vector<8x128xf32>
    %113 = arith.index_cast %c6_i32 : i32 to index
    %c0_54 = arith.constant 0 : index
    %c0_55 = arith.constant 0 : index
    %114 = vector.load %arg5[%113, %c0_54, %c0_55] : memref<8x8x128xf32, #tpu.memory_space<vmem>>, vector<1x8x128xf32>
    %115 = vector.shape_cast %114 : vector<1x8x128xf32> to vector<8x128xf32>
    %116 = vector.shape_cast %112 : vector<8x128xf32> to vector<1x8x128xf32>
    tpu.vector_store %arg5[%113, %c0_54, %c0_55], %116 {strides = array<i32>} : memref<8x8x128xf32, #tpu.memory_space<vmem>>, vector<1x8x128xf32>,
    %c7_i32 = arith.constant 7 : i32
    %117 = arith.index_cast %c7_i32 : i32 to index
    %c0_56 = arith.constant 0 : index
    %c0_57 = arith.constant 0 : index
    %118 = vector.load %arg0[%117, %c0_56, %c0_57] : memref<8x8x128xf32, #tpu.memory_space<vmem>>, vector<1x8x128xf32>
    %119 = vector.shape_cast %118 : vector<1x8x128xf32> to vector<8x128xf32>
    %cst_58 = arith.constant dense<0.000000e+00> : vector<8x128xf32>
    %120 = tpu.matmul %106, %0, %cst_58 {dimension_numbers = #tpu.dot_dimension_numbers<[1], [0], [0], [1], [0, 0, 1, 1], [], []>} : vector<8x128xf32>, vector<128x128xf32>, vector<8x128xf32> -> vector<8x128xf32>
    %121 = arith.addf %119, %120 : vector<8x128xf32>
    %122 = math.tanh %121 : vector<8x128xf32>
    %cst_59 = arith.constant dense<0.000000e+00> : vector<8x128xf32>
    %123 = tpu.matmul %122, %1, %cst_59 {dimension_numbers = #tpu.dot_dimension_numbers<[1], [0], [0], [1], [0, 0, 1, 1], [], []>} : vector<8x128xf32>, vector<128x128xf32>, vector<8x128xf32> -> vector<8x128xf32>
    %cst_60 = arith.constant dense<0.000000e+00> : vector<8x128xf32>
    %124 = tpu.matmul %112, %2, %cst_60 {dimension_numbers = #tpu.dot_dimension_numbers<[1], [0], [0], [1], [0, 0, 1, 1], [], []>} : vector<8x128xf32>, vector<128x128xf32>, vector<8x128xf32> -> vector<8x128xf32>
    %125 = arith.addf %123, %124 : vector<8x128xf32>
    %126 = vector.broadcast %3 : vector<1x128xf32> to vector<8x128xf32>
    %127 = arith.addf %125, %126 : vector<8x128xf32>
    %128 = math.tanh %127 : vector<8x128xf32>
    %129 = arith.index_cast %c7_i32 : i32 to index
    %c0_61 = arith.constant 0 : index
    %c0_62 = arith.constant 0 : index
    %130 = vector.load %arg5[%129, %c0_61, %c0_62] : memref<8x8x128xf32, #tpu.memory_space<vmem>>, vector<1x8x128xf32>
    %131 = vector.shape_cast %130 : vector<1x8x128xf32> to vector<8x128xf32>
    %132 = vector.shape_cast %128 : vector<8x128xf32> to vector<1x8x128xf32>
    tpu.vector_store %arg5[%129, %c0_61, %c0_62], %132 {strides = array<i32>} : memref<8x8x128xf32, #tpu.memory_space<vmem>>, vector<1x8x128xf32>,
    %c8_i32 = arith.constant 8 : i32
    return
  }
}

</mosaic_0001>

<llo_original>
// kernel: rnn1_forward.1
$region0: #{rnn1_forward.1}
  #allocation0 [shape = 'u32[]', space=smem, size = 0x4, offset = 0x4, fixed_abs, tag = 'smem constant byte address 0x4 - core index']
  #allocation1 [shape = 'u32[144,128]{1,0:T(1,128)}', space=vmem, size = 0x12000, scoped, tag = 'internal scratch']
  %s0 = inlined_call_operand.vmem [shape: f32[8,8,128], index: 0, kind: input, shape index: {}]
  %s1 = inlined_call_operand.vmem [shape: f32[128,128], index: 1, kind: input, shape index: {}]
  %s2 = inlined_call_operand.vmem [shape: f32[128,128], index: 2, kind: input, shape index: {}]
  %s3 = inlined_call_operand.vmem [shape: f32[128,128], index: 3, kind: input, shape index: {}]
  %s4 = inlined_call_operand.vmem [shape: f32[1,128], index: 4, kind: input, shape index: {}]
  %s5 = inlined_call_operand.vmem [shape: f32[8,8,128], index: 5, kind: output, shape index: {}]
  %s6 = sld [smem:[#allocation0]]
  $region30: #{rnn1_forward.1} parent=0
    _
  %s8 = ssub.s32 1, %s6
  %s9 = scalar_select 0, %s8, %s6
  // Predicated region
  $region2: #{rnn1_forward.1} parent=0 // pred_check
    _
  $region3: #{rnn1_forward.1} parent=0 // pred_check_branch
    %11 = sbr.rel (0) target = $region5
  $region4: #{rnn1_forward.1} parent=0 // pred_region
    _
  $region5: #{rnn1_forward.1} parent=0 // pred_fallthru
    _
  // Predicated region
  $region6: #{rnn1_forward.1} parent=0 // pred_check
    _
  $region7: #{rnn1_forward.1} parent=0 // pred_check_branch
    %13 = sbr.rel (0) target = $region9
  $region8: #{rnn1_forward.1} parent=0 // pred_region
    _
  $region9: #{rnn1_forward.1} parent=0 // pred_fallthru
    _
  // Predicated region
  $region10: #{rnn1_forward.1} parent=0 // pred_check
    _
  $region11: #{rnn1_forward.1} parent=0 // pred_check_branch
    %15 = sbr.rel (0) target = $region13
  $region12: #{rnn1_forward.1} parent=0 // pred_region
    _
  $region13: #{rnn1_forward.1} parent=0 // pred_fallthru
    _
  // Predicated region
  $region14: #{rnn1_forward.1} parent=0 // pred_check
    _
  $region15: #{rnn1_forward.1} parent=0 // pred_check_branch
    %17 = sbr.rel (0) target = $region17
  $region16: #{rnn1_forward.1} parent=0 // pred_region
    _
  $region17: #{rnn1_forward.1} parent=0 // pred_fallthru
    _
  // Predicated region
  $region18: #{rnn1_forward.1} parent=0 // pred_check
    _
  $region19: #{rnn1_forward.1} parent=0 // pred_check_branch
    %19 = sbr.rel (0) target = $region21
  $region20: #{rnn1_forward.1} parent=0 // pred_region
    _
  $region21: #{rnn1_forward.1} parent=0 // pred_fallthru
    _
  %v20 = vld [vmem:[%s1] sm:$0xff]
  %v21 = vld [vmem:[%s1 + $0x8] sm:$0xff]
  %v22 = vld [vmem:[%s1 + $0x10] sm:$0xff]
  %v23 = vld [vmem:[%s1 + $0x18] sm:$0xff]
  %v24 = vld [vmem:[%s1 + $0x20] sm:$0xff]
  %v25 = vld [vmem:[%s1 + $0x28] sm:$0xff]
  %v26 = vld [vmem:[%s1 + $0x30] sm:$0xff]
  %v27 = vld [vmem:[%s1 + $0x38] sm:$0xff]
  %v28 = vld [vmem:[%s1 + $0x40] sm:$0xff]
  %v29 = vld [vmem:[%s1 + $0x48] sm:$0xff]
  %v30 = vld [vmem:[%s1 + $0x50] sm:$0xff]
  %v31 = vld [vmem:[%s1 + $0x58] sm:$0xff]
  %v32 = vld [vmem:[%s1 + $0x60] sm:$0xff]
  %v33 = vld [vmem:[%s1 + $0x68] sm:$0xff]
  %v34 = vld [vmem:[%s1 + $0x70] sm:$0xff]
  %v35 = vld [vmem:[%s1 + $0x78] sm:$0xff]
  %v36 = vld [vmem:[%s2] sm:$0xff]
  %v37 = vld [vmem:[%s2 + $0x8] sm:$0xff]
  %v38 = vld [vmem:[%s2 + $0x10] sm:$0xff]
  %v39 = vld [vmem:[%s2 + $0x18] sm:$0xff]
  %v40 = vld [vmem:[%s2 + $0x20] sm:$0xff]
  %v41 = vld [vmem:[%s2 + $0x28] sm:$0xff]
  %v42 = vld [vmem:[%s2 + $0x30] sm:$0xff]
  %v43 = vld [vmem:[%s2 + $0x38] sm:$0xff]
  %v44 = vld [vmem:[%s2 + $0x40] sm:$0xff]
  %v45 = vld [vmem:[%s2 + $0x48] sm:$0xff]
  %v46 = vld [vmem:[%s2 + $0x50] sm:$0xff]
  %v47 = vld [vmem:[%s2 + $0x58] sm:$0xff]
  %v48 = vld [vmem:[%s2 + $0x60] sm:$0xff]
  %v49 = vld [vmem:[%s2 + $0x68] sm:$0xff]
  %v50 = vld [vmem:[%s2 + $0x70] sm:$0xff]
  %v51 = vld [vmem:[%s2 + $0x78] sm:$0xff]
  %v52 = vld [vmem:[%s3] sm:$0xff]
  %v53 = vld [vmem:[%s3 + $0x8] sm:$0xff]
  %v54 = vld [vmem:[%s3 + $0x10] sm:$0xff]
  %v55 = vld [vmem:[%s3 + $0x18] sm:$0xff]
  %v56 = vld [vmem:[%s3 + $0x20] sm:$0xff]
  %v57 = vld [vmem:[%s3 + $0x28] sm:$0xff]
  %v58 = vld [vmem:[%s3 + $0x30] sm:$0xff]
  %v59 = vld [vmem:[%s3 + $0x38] sm:$0xff]
  %v60 = vld [vmem:[%s3 + $0x40] sm:$0xff]
  %v61 = vld [vmem:[%s3 + $0x48] sm:$0xff]
  %v62 = vld [vmem:[%s3 + $0x50] sm:$0xff]
  %v63 = vld [vmem:[%s3 + $0x58] sm:$0xff]
  %v64 = vld [vmem:[%s3 + $0x60] sm:$0xff]
  %v65 = vld [vmem:[%s3 + $0x68] sm:$0xff]
  %v66 = vld [vmem:[%s3 + $0x70] sm:$0xff]
  %v67 = vld [vmem:[%s3 + $0x78] sm:$0xff]
  %v68 = vld [vmem:[%s4] sm:$0x1]
  %v69 = vld [vmem:[%s0] sm:$0xff]
  %70 = vmatprep.subr.mxu0 0.0
  %71 = vmatpush1.msra.mxu0 %v20
  %72 = vmatprep.subr.mxu0 0.0
  %73 = vmatpush1.msra.mxu0 %v21
  %74 = vmatprep.subr.mxu0 0.0
  %75 = vmatpush1.msra.mxu0 %v22
  %76 = vmatprep.subr.mxu0 0.0
  %77 = vmatpush1.msra.mxu0 %v23
  %78 = vmatprep.subr.mxu0 0.0
  %79 = vmatpush1.msra.mxu0 %v24
  %80 = vmatprep.subr.mxu0 0.0
  %81 = vmatpush1.msra.mxu0 %v25
  %82 = vmatprep.subr.mxu0 0.0
  %83 = vmatpush1.msra.mxu0 %v26
  %84 = vmatprep.subr.mxu0 0.0
  %85 = vmatpush1.msra.mxu0 %v27
  %86 = vmatprep.subr.mxu0 0.0
  %87 = vmatpush1.msra.mxu0 %v28
  %88 = vmatprep.subr.mxu0 0.0
  %89 = vmatpush1.msra.mxu0 %v29
  %90 = vmatprep.subr.mxu0 0.0
  %91 = vmatpush1.msra.mxu0 %v30
  %92 = vmatprep.subr.mxu0 0.0
  %93 = vmatpush1.msra.mxu0 %v31
  %94 = vmatprep.subr.mxu0 0.0
  %95 = vmatpush1.msra.mxu0 %v32
  %96 = vmatprep.subr.mxu0 0.0
  %97 = vmatpush1.msra.mxu0 %v33
  %98 = vmatprep.subr.mxu0 0.0
  %99 = vmatpush1.msra.mxu0 %v34
  %100 = vmatprep.subr.mxu0 0.0
  %101 = vmatpush1.msra.mxu0 %v35
  %102 = vmatprep.subr.mxu0 0.0
  %103 = vmatpush1.msra.mxu0 0.0
  %104 = vmatprep.subr.mxu0 0.0
  %105 = vmatpush1.msra.mxu0 0.0
  %106 = vmatprep.subr.mxu0 0.0
  %107 = vmatpush1.msra.mxu0 0.0
  %108 = vmatprep.subr.mxu0 0.0
  %109 = vmatpush1.msra.mxu0 0.0
  %110 = vmatprep.subr.mxu0 0.0
  %111 = vmatpush1.msra.mxu0 0.0
  %112 = vmatprep.subr.mxu0 0.0
  %113 = vmatpush1.msra.mxu0 0.0
  %114 = vmatprep.subr.mxu0 0.0
  %115 = vmatpush1.msra.mxu0 0.0
  %116 = vmatprep.subr.mxu0 0.0
  %117 = vmatpush1.msra.mxu0 0.0
  %118 = vmatprep.subr.mxu0 0.0
  %119 = vmatpush1.msra.mxu0 0.0
  %120 = vmatprep.subr.mxu0 0.0
  %121 = vmatpush1.msra.mxu0 0.0
  %122 = vmatprep.subr.mxu0 0.0
  %123 = vmatpush1.msra.mxu0 0.0
  %124 = vmatprep.subr.mxu0 0.0
  %125 = vmatpush1.msra.mxu0 0.0
  %126 = vmatprep.subr.mxu0 0.0
  %127 = vmatpush1.msra.mxu0 0.0
  %128 = vmatprep.subr.mxu0 0.0
  %129 = vmatpush1.msra.mxu0 0.0
  %130 = vmatprep.subr.mxu0 0.0
  %131 = vmatpush1.msra.mxu0 0.0
  %132 = vmatprep.subr.mxu0 0.0
  %133 = vmatpush1.msra.mxu0 0.0
  %134 = vmatprep.mubr.f32.mxu0 0.0
  %135 = vmatmul.mubr.f32.gmra.mrb[0].mxu0 0.0
  %v136 = vpop.f32.mrb[0].mxu0
  %v137 = vadd.f32 0.0, %v136
  %v138 = vpop.f32.mrb[0].mxu0
  %139 = vdwg.mxu0
  %v140 = vadd.f32 %v69, %v137
  %v141 = vtanh.pop %v140
  %142 = vmatprep.subr.mxu0 0.0
  %143 = vmatpush1.msra.mxu0 %v52
  %144 = vmatprep.subr.mxu0 0.0
  %145 = vmatpush1.msra.mxu0 %v53
  %146 = vmatprep.subr.mxu0 0.0
  %147 = vmatpush1.msra.mxu0 %v54
  %148 = vmatprep.subr.mxu0 0.0
  %149 = vmatpush1.msra.mxu0 %v55
  %150 = vmatprep.subr.mxu0 0.0
  %151 = vmatpush1.msra.mxu0 %v56
  %152 = vmatprep.subr.mxu0 0.0
  %153 = vmatpush1.msra.mxu0 %v57
  %154 = vmatprep.subr.mxu0 0.0
  %155 = vmatpush1.msra.mxu0 %v58
  %156 = vmatprep.subr.mxu0 0.0
  %157 = vmatpush1.msra.mxu0 %v59
  %158 = vmatprep.subr.mxu0 0.0
  %159 = vmatpush1.msra.mxu0 %v60
  %160 = vmatprep.subr.mxu0 0.0
  %161 = vmatpush1.msra.mxu0 %v61
  %162 = vmatprep.subr.mxu0 0.0
  %163 = vmatpush1.msra.mxu0 %v62
  %164 = vmatprep.subr.mxu0 0.0
  %165 = vmatpush1.msra.mxu0 %v63
  %166 = vmatprep.subr.mxu0 0.0
  %167 = vmatpush1.msra.mxu0 %v64
  %168 = vmatprep.subr.mxu0 0.0
  %169 = vmatpush1.msra.mxu0 %v65
  %170 = vmatprep.subr.mxu0 0.0
  %171 = vmatpush1.msra.mxu0 %v66
  %172 = vmatprep.subr.mxu0 0.0
  %173 = vmatpush1.msra.mxu0 %v67
  %174 = vmatprep.subr.mxu0 0.0
  %175 = vmatpush1.msra.mxu0 0.0
  %176 = vmatprep.subr.mxu0 0.0
  %177 = vmatpush1.msra.mxu0 0.0
  %178 = vmatprep.subr.mxu0 0.0
  %179 = vmatpush1.msra.mxu0 0.0
  %180 = vmatprep.subr.mxu0 0.0
  %181 = vmatpush1.msra.mxu0 0.0
  %182 = vmatprep.subr.mxu0 0.0
  %183 = vmatpush1.msra.mxu0 0.0
  %184 = vmatprep.subr.mxu0 0.0
  %185 = vmatpush1.msra.mxu0 0.0
  %186 = vmatprep.subr.mxu0 0.0
  %187 = vmatpush1.msra.mxu0 0.0
  %188 = vmatprep.subr.mxu0 0.0
  %189 = vmatpush1.msra.mxu0 0.0
  %190 = vmatprep.subr.mxu0 0.0
  %191 = vmatpush1.msra.mxu0 0.0
  %192 = vmatprep.subr.mxu0 0.0
  %193 = vmatpush1.msra.mxu0 0.0
  %194 = vmatprep.subr.mxu0 0.0
  %195 = vmatpush1.msra.mxu0 0.0
  %196 = vmatprep.subr.mxu0 0.0
  %197 = vmatpush1.msra.mxu0 0.0
  %198 = vmatprep.subr.mxu0 0.0
  %199 = vmatpush1.msra.mxu0 0.0
  %200 = vmatprep.subr.mxu0 0.0
  %201 = vmatpush1.msra.mxu0 0.0
  %202 = vmatprep.subr.mxu0 0.0
  %203 = vmatpush1.msra.mxu0 0.0
  %204 = vmatprep.subr.mxu0 0.0
  %205 = vmatpush1.msra.mxu0 0.0
  %206 = vmatprep.mubr.f32.mxu0 0.0
  %207 = vmatmul.mubr.f32.gmra.mrb[0].mxu0 0.0
  %v208 = vpop.f32.mrb[0].mxu0
  %v209 = vadd.f32 0.0, %v208
  %v210 = vpop.f32.mrb[0].mxu0
  %211 = vdwg.mxu0
  %212 = vmatprep.subr.mxu0 0.0
  %213 = vmatpush1.msra.mxu0 %v36
  %214 = vmatprep.subr.mxu0 0.0
  %215 = vmatpush1.msra.mxu0 %v37
  %216 = vmatprep.subr.mxu0 0.0
  %217 = vmatpush1.msra.mxu0 %v38
  %218 = vmatprep.subr.mxu0 0.0
  %219 = vmatpush1.msra.mxu0 %v39
  %220 = vmatprep.subr.mxu0 0.0
  %221 = vmatpush1.msra.mxu0 %v40
  %222 = vmatprep.subr.mxu0 0.0
  %223 = vmatpush1.msra.mxu0 %v41
  %224 = vmatprep.subr.mxu0 0.0
  %225 = vmatpush1.msra.mxu0 %v42
  %226 = vmatprep.subr.mxu0 0.0
  %227 = vmatpush1.msra.mxu0 %v43
  %228 = vmatprep.subr.mxu0 0.0
  %229 = vmatpush1.msra.mxu0 %v44
  %230 = vmatprep.subr.mxu0 0.0
  %231 = vmatpush1.msra.mxu0 %v45
  %232 = vmatprep.subr.mxu0 0.0
  %233 = vmatpush1.msra.mxu0 %v46
  %234 = vmatprep.subr.mxu0 0.0
  %235 = vmatpush1.msra.mxu0 %v47
  %236 = vmatprep.subr.mxu0 0.0
  %237 = vmatpush1.msra.mxu0 %v48
  %238 = vmatprep.subr.mxu0 0.0
  %239 = vmatpush1.msra.mxu0 %v49
  %240 = vmatprep.subr.mxu0 0.0
  %241 = vmatpush1.msra.mxu0 %v50
  %242 = vmatprep.subr.mxu0 0.0
  %243 = vmatpush1.msra.mxu0 %v51
  %244 = vmatprep.subr.mxu0 0.0
  %245 = vmatpush1.msra.mxu0 0.0
  %246 = vmatprep.subr.mxu0 0.0
  %247 = vmatpush1.msra.mxu0 0.0
  %248 = vmatprep.subr.mxu0 0.0
  %249 = vmatpush1.msra.mxu0 0.0
  %250 = vmatprep.subr.mxu0 0.0
  %251 = vmatpush1.msra.mxu0 0.0
  %252 = vmatprep.subr.mxu0 0.0
  %253 = vmatpush1.msra.mxu0 0.0
  %254 = vmatprep.subr.mxu0 0.0
  %255 = vmatpush1.msra.mxu0 0.0
  %256 = vmatprep.subr.mxu0 0.0
  %257 = vmatpush1.msra.mxu0 0.0
  %258 = vmatprep.subr.mxu0 0.0
  %259 = vmatpush1.msra.mxu0 0.0
  %260 = vmatprep.subr.mxu0 0.0
  %261 = vmatpush1.msra.mxu0 0.0
  %262 = vmatprep.subr.mxu0 0.0
  %263 = vmatpush1.msra.mxu0 0.0
  %264 = vmatprep.subr.mxu0 0.0
  %265 = vmatpush1.msra.mxu0 0.0
  %266 = vmatprep.subr.mxu0 0.0
  %267 = vmatpush1.msra.mxu0 0.0
  %268 = vmatprep.subr.mxu0 0.0
  %269 = vmatpush1.msra.mxu0 0.0
  %270 = vmatprep.subr.mxu0 0.0
  %271 = vmatpush1.msra.mxu0 0.0
  %272 = vmatprep.subr.mxu0 0.0
  %273 = vmatpush1.msra.mxu0 0.0
  %274 = vmatprep.subr.mxu0 0.0
  %275 = vmatpush1.msra.mxu0 0.0
  %276 = vmatprep.mubr.f32.mxu0 0.0
  %277 = vmatmul.mubr.f32.gmra.mrb[0].mxu0 %v141
  %v278 = vpop.f32.mrb[0].mxu0
  %v279 = vadd.f32 %v209, %v278
  %v280 = vpop.f32.mrb[0].mxu0
  %281 = vdwg.mxu0
  %v283 = vlaneseq
  %v284 = vshrl.u32 %v283, 7
  %v285 = vsub.s32 0, %v284
  %v286 = vrot.slane %v68, %v285
  %v288 = vadd.f32 %v279, %v286
  %v289 = vtanh.pop %v288
  %290 = vst [vmem:[%s5] sm:$0xff] %v289
  %s291 = scalar_lea.vmem %s0, 8
  %v292 = vld [vmem:[%s291] sm:$0xff]
  %293 = vmatprep.subr.mxu0 0.0
  %294 = vmatpush1.msra.mxu0 %v20
  %295 = vmatprep.subr.mxu0 0.0
  %296 = vmatpush1.msra.mxu0 %v21
  %297 = vmatprep.subr.mxu0 0.0
  %298 = vmatpush1.msra.mxu0 %v22
  %299 = vmatprep.subr.mxu0 0.0
  %300 = vmatpush1.msra.mxu0 %v23
  %301 = vmatprep.subr.mxu0 0.0
  %302 = vmatpush1.msra.mxu0 %v24
  %303 = vmatprep.subr.mxu0 0.0
  %304 = vmatpush1.msra.mxu0 %v25
  %305 = vmatprep.subr.mxu0 0.0
  %306 = vmatpush1.msra.mxu0 %v26
  %307 = vmatprep.subr.mxu0 0.0
  %308 = vmatpush1.msra.mxu0 %v27
  %309 = vmatprep.subr.mxu0 0.0
  %310 = vmatpush1.msra.mxu0 %v28
  %311 = vmatprep.subr.mxu0 0.0
  %312 = vmatpush1.msra.mxu0 %v29
  %313 = vmatprep.subr.mxu0 0.0
  %314 = vmatpush1.msra.mxu0 %v30
  %315 = vmatprep.subr.mxu0 0.0
  %316 = vmatpush1.msra.mxu0 %v31
  %317 = vmatprep.subr.mxu0 0.0
  %318 = vmatpush1.msra.mxu0 %v32
  %319 = vmatprep.subr.mxu0 0.0
  %320 = vmatpush1.msra.mxu0 %v33
  %321 = vmatprep.subr.mxu0 0.0
  %322 = vmatpush1.msra.mxu0 %v34
  %323 = vmatprep.subr.mxu0 0.0
  %324 = vmatpush1.msra.mxu0 %v35
  %325 = vmatprep.subr.mxu0 0.0
  %326 = vmatpush1.msra.mxu0 0.0
  %327 = vmatprep.subr.mxu0 0.0
  %328 = vmatpush1.msra.mxu0 0.0
  %329 = vmatprep.subr.mxu0 0.0
  %330 = vmatpush1.msra.mxu0 0.0
  %331 = vmatprep.subr.mxu0 0.0
  %332 = vmatpush1.msra.mxu0 0.0
  %333 = vmatprep.subr.mxu0 0.0
  %334 = vmatpush1.msra.mxu0 0.0
  %335 = vmatprep.subr.mxu0 0.0
  %336 = vmatpush1.msra.mxu0 0.0
  %337 = vmatprep.subr.mxu0 0.0
  %338 = vmatpush1.msra.mxu0 0.0
  %339 = vmatprep.subr.mxu0 0.0
  %340 = vmatpush1.msra.mxu0 0.0
  %341 = vmatprep.subr.mxu0 0.0
  %342 = vmatpush1.msra.mxu0 0.0
  %343 = vmatprep.subr.mxu0 0.0
  %344 = vmatpush1.msra.mxu0 0.0
  %345 = vmatprep.subr.mxu0 0.0
  %346 = vmatpush1.msra.mxu0 0.0
  %347 = vmatprep.subr.mxu0 0.0
  %348 = vmatpush1.msra.mxu0 0.0
  %349 = vmatprep.subr.mxu0 0.0
  %350 = vmatpush1.msra.mxu0 0.0
  %351 = vmatprep.subr.mxu0 0.0
  %352 = vmatpush1.msra.mxu0 0.0
  %353 = vmatprep.subr.mxu0 0.0
  %354 = vmatpush1.msra.mxu0 0.0
  %355 = vmatprep.subr.mxu0 0.0
  %356 = vmatpush1.msra.mxu0 0.0
  %357 = vmatprep.mubr.f32.mxu0 0.0
  %358 = vmatmul.mubr.f32.gmra.mrb[0].mxu0 %v141
  %v359 = vpop.f32.mrb[0].mxu0
  %v360 = vadd.f32 0.0, %v359
  %v361 = vpop.f32.mrb[0].mxu0
  %362 = vdwg.mxu0
  %v363 = vadd.f32 %v292, %v360
  %v364 = vtanh.pop %v363
  %365 = vmatprep.subr.mxu0 0.0
  %366 = vmatpush1.msra.mxu0 %v52
  %367 = vmatprep.subr.mxu0 0.0
  %368 = vmatpush1.msra.mxu0 %v53
  %369 = vmatprep.subr.mxu0 0.0
  %370 = vmatpush1.msra.mxu0 %v54
  %371 = vmatprep.subr.mxu0 0.0
  %372 = vmatpush1.msra.mxu0 %v55
  %373 = vmatprep.subr.mxu0 0.0
  %374 = vmatpush1.msra.mxu0 %v56
  %375 = vmatprep.subr.mxu0 0.0
  %376 = vmatpush1.msra.mxu0 %v57
  %377 = vmatprep.subr.mxu0 0.0
  %378 = vmatpush1.msra.mxu0 %v58
  %379 = vmatprep.subr.mxu0 0.0
  %380 = vmatpush1.msra.mxu0 %v59
  %381 = vmatprep.subr.mxu0 0.0
  %382 = vmatpush1.msra.mxu0 %v60
  %383 = vmatprep.subr.mxu0 0.0
  %384 = vmatpush1.msra.mxu0 %v61
  %385 = vmatprep.subr.mxu0 0.0
  %386 = vmatpush1.msra.mxu0 %v62
  %387 = vmatprep.subr.mxu0 0.0
  %388 = vmatpush1.msra.mxu0 %v63
  %389 = vmatprep.subr.mxu0 0.0
  %390 = vmatpush1.msra.mxu0 %v64
  %391 = vmatprep.subr.mxu0 0.0
  %392 = vmatpush1.msra.mxu0 %v65
  %393 = vmatprep.subr.mxu0 0.0
  %394 = vmatpush1.msra.mxu0 %v66
  %395 = vmatprep.subr.mxu0 0.0
  %396 = vmatpush1.msra.mxu0 %v67
  %397 = vmatprep.subr.mxu0 0.0
  %398 = vmatpush1.msra.mxu0 0.0
  %399 = vmatprep.subr.mxu0 0.0
  %400 = vmatpush1.msra.mxu0 0.0
  %401 = vmatprep.subr.mxu0 0.0
  %402 = vmatpush1.msra.mxu0 0.0
  %403 = vmatprep.subr.mxu0 0.0
  %404 = vmatpush1.msra.mxu0 0.0
  %405 = vmatprep.subr.mxu0 0.0
  %406 = vmatpush1.msra.mxu0 0.0
  %407 = vmatprep.subr.mxu0 0.0
  %408 = vmatpush1.msra.mxu0 0.0
  %409 = vmatprep.subr.mxu0 0.0
  %410 = vmatpush1.msra.mxu0 0.0
  %411 = vmatprep.subr.mxu0 0.0
  %412 = vmatpush1.msra.mxu0 0.0
  %413 = vmatprep.subr.mxu0 0.0
  %414 = vmatpush1.msra.mxu0 0.0
  %415 = vmatprep.subr.mxu0 0.0
  %416 = vmatpush1.msra.mxu0 0.0
  %417 = vmatprep.subr.mxu0 0.0
  %418 = vmatpush1.msra.mxu0 0.0
  %419 = vmatprep.subr.mxu0 0.0
  %420 = vmatpush1.msra.mxu0 0.0
  %421 = vmatprep.subr.mxu0 0.0
  %422 = vmatpush1.msra.mxu0 0.0
  %423 = vmatprep.subr.mxu0 0.0
  %424 = vmatpush1.msra.mxu0 0.0
  %425 = vmatprep.subr.mxu0 0.0
  %426 = vmatpush1.msra.mxu0 0.0
  %427 = vmatprep.subr.mxu0 0.0
  %428 = vmatpush1.msra.mxu0 0.0
  %429 = vmatprep.mubr.f32.mxu0 0.0
  %430 = vmatmul.mubr.f32.gmra.mrb[0].mxu0 %v289
  %v431 = vpop.f32.mrb[0].mxu0
  %v432 = vadd.f32 0.0, %v431
  %v433 = vpop.f32.mrb[0].mxu0
  %434 = vdwg.mxu0
  %435 = vmatprep.subr.mxu0 0.0
  %436 = vmatpush1.msra.mxu0 %v36
  %437 = vmatprep.subr.mxu0 0.0
  %438 = vmatpush1.msra.mxu0 %v37
  %439 = vmatprep.subr.mxu0 0.0
  %440 = vmatpush1.msra.mxu0 %v38
  %441 = vmatprep.subr.mxu0 0.0
  %442 = vmatpush1.msra.mxu0 %v39
  %443 = vmatprep.subr.mxu0 0.0
  %444 = vmatpush1.msra.mxu0 %v40
  %445 = vmatprep.subr.mxu0 0.0
  %446 = vmatpush1.msra.mxu0 %v41
  %447 = vmatprep.subr.mxu0 0.0
  %448 = vmatpush1.msra.mxu0 %v42
  %449 = vmatprep.subr.mxu0 0.0
  %450 = vmatpush1.msra.mxu0 %v43
  %451 = vmatprep.subr.mxu0 0.0
  %452 = vmatpush1.msra.mxu0 %v44
  %453 = vmatprep.subr.mxu0 0.0
  %454 = vmatpush1.msra.mxu0 %v45
  %455 = vmatprep.subr.mxu0 0.0
  %456 = vmatpush1.msra.mxu0 %v46
  %457 = vmatprep.subr.mxu0 0.0
  %458 = vmatpush1.msra.mxu0 %v47
  %459 = vmatprep.subr.mxu0 0.0
  %460 = vmatpush1.msra.mxu0 %v48
  %461 = vmatprep.subr.mxu0 0.0
  %462 = vmatpush1.msra.mxu0 %v49
  %463 = vmatprep.subr.mxu0 0.0
  %464 = vmatpush1.msra.mxu0 %v50
  %465 = vmatprep.subr.mxu0 0.0
  %466 = vmatpush1.msra.mxu0 %v51
  %467 = vmatprep.subr.mxu0 0.0
  %468 = vmatpush1.msra.mxu0 0.0
  %469 = vmatprep.subr.mxu0 0.0
  %470 = vmatpush1.msra.mxu0 0.0
  %471 = vmatprep.subr.mxu0 0.0
  %472 = vmatpush1.msra.mxu0 0.0
  %473 = vmatprep.subr.mxu0 0.0
  %474 = vmatpush1.msra.mxu0 0.0
  %475 = vmatprep.subr.mxu0 0.0
  %476 = vmatpush1.msra.mxu0 0.0
  %477 = vmatprep.subr.mxu0 0.0
  %478 = vmatpush1.msra.mxu0 0.0
  %479 = vmatprep.subr.mxu0 0.0
  %480 = vmatpush1.msra.mxu0 0.0
  %481 = vmatprep.subr.mxu0 0.0
  %482 = vmatpush1.msra.mxu0 0.0
  %483 = vmatprep.subr.mxu0 0.0
  %484 = vmatpush1.msra.mxu0 0.0
  %485 = vmatprep.subr.mxu0 0.0
  %486 = vmatpush1.msra.mxu0 0.0
  %487 = vmatprep.subr.mxu0 0.0
  %488 = vmatpush1.msra.mxu0 0.0
  %489 = vmatprep.subr.mxu0 0.0
  %490 = vmatpush1.msra.mxu0 0.0
  %491 = vmatprep.subr.mxu0 0.0
  %492 = vmatpush1.msra.mxu0 0.0
  %493 = vmatprep.subr.mxu0 0.0
  %494 = vmatpush1.msra.mxu0 0.0
  %495 = vmatprep.subr.mxu0 0.0
  %496 = vmatpush1.msra.mxu0 0.0
  %497 = vmatprep.subr.mxu0 0.0
  %498 = vmatpush1.msra.mxu0 0.0
  %499 = vmatprep.mubr.f32.mxu0 0.0
  %500 = vmatmul.mubr.f32.gmra.mrb[0].mxu0 %v364
  %v501 = vpop.f32.mrb[0].mxu0
  %v502 = vadd.f32 %v432, %v501
  %v503 = vpop.f32.mrb[0].mxu0
  %504 = vdwg.mxu0
  %v505 = vadd.f32 %v502, %v286
  %v506 = vtanh.pop %v505
  %s507 = scalar_lea.vmem %s5, 8
  %508 = vst [vmem:[%s507] sm:$0xff] %v506
  %s509 = scalar_lea.vmem %s0, 16
  %v510 = vld [vmem:[%s509] sm:$0xff]
  %511 = vmatprep.subr.mxu0 0.0
  %512 = vmatpush1.msra.mxu0 %v20
  %513 = vmatprep.subr.mxu0 0.0
  %514 = vmatpush1.msra.mxu0 %v21
  %515 = vmatprep.subr.mxu0 0.0
  %516 = vmatpush1.msra.mxu0 %v22
  %517 = vmatprep.subr.mxu0 0.0
  %518 = vmatpush1.msra.mxu0 %v23
  %519 = vmatprep.subr.mxu0 0.0
  %520 = vmatpush1.msra.mxu0 %v24
  %521 = vmatprep.subr.mxu0 0.0
  %522 = vmatpush1.msra.mxu0 %v25
  %523 = vmatprep.subr.mxu0 0.0
  %524 = vmatpush1.msra.mxu0 %v26
  %525 = vmatprep.subr.mxu0 0.0
  %526 = vmatpush1.msra.mxu0 %v27
  %527 = vmatprep.subr.mxu0 0.0
  %528 = vmatpush1.msra.mxu0 %v28
  %529 = vmatprep.subr.mxu0 0.0
  %530 = vmatpush1.msra.mxu0 %v29
  %531 = vmatprep.subr.mxu0 0.0
  %532 = vmatpush1.msra.mxu0 %v30
  %533 = vmatprep.subr.mxu0 0.0
  %534 = vmatpush1.msra.mxu0 %v31
  %535 = vmatprep.subr.mxu0 0.0
  %536 = vmatpush1.msra.mxu0 %v32
  %537 = vmatprep.subr.mxu0 0.0
  %538 = vmatpush1.msra.mxu0 %v33
  %539 = vmatprep.subr.mxu0 0.0
  %540 = vmatpush1.msra.mxu0 %v34
  %541 = vmatprep.subr.mxu0 0.0
  %542 = vmatpush1.msra.mxu0 %v35
  %543 = vmatprep.subr.mxu0 0.0
  %544 = vmatpush1.msra.mxu0 0.0
  %545 = vmatprep.subr.mxu0 0.0
  %546 = vmatpush1.msra.mxu0 0.0
  %547 = vmatprep.subr.mxu0 0.0
  %548 = vmatpush1.msra.mxu0 0.0
  %549 = vmatprep.subr.mxu0 0.0
  %550 = vmatpush1.msra.mxu0 0.0
  %551 = vmatprep.subr.mxu0 0.0
  %552 = vmatpush1.msra.mxu0 0.0
  %553 = vmatprep.subr.mxu0 0.0
  %554 = vmatpush1.msra.mxu0 0.0
  %555 = vmatprep.subr.mxu0 0.0
  %556 = vmatpush1.msra.mxu0 0.0
  %557 = vmatprep.subr.mxu0 0.0
  %558 = vmatpush1.msra.mxu0 0.0
  %559 = vmatprep.subr.mxu0 0.0
  %560 = vmatpush1.msra.mxu0 0.0
  %561 = vmatprep.subr.mxu0 0.0
  %562 = vmatpush1.msra.mxu0 0.0
  %563 = vmatprep.subr.mxu0 0.0
  %564 = vmatpush1.msra.mxu0 0.0
  %565 = vmatprep.subr.mxu0 0.0
  %566 = vmatpush1.msra.mxu0 0.0
  %567 = vmatprep.subr.mxu0 0.0
  %568 = vmatpush1.msra.mxu0 0.0
  %569 = vmatprep.subr.mxu0 0.0
  %570 = vmatpush1.msra.mxu0 0.0
  %571 = vmatprep.subr.mxu0 0.0
  %572 = vmatpush1.msra.mxu0 0.0
  %573 = vmatprep.subr.mxu0 0.0
  %574 = vmatpush1.msra.mxu0 0.0
  %575 = vmatprep.mubr.f32.mxu0 0.0
  %576 = vmatmul.mubr.f32.gmra.mrb[0].mxu0 %v364
  %v577 = vpop.f32.mrb[0].mxu0
  %v578 = vadd.f32 0.0, %v577
  %v579 = vpop.f32.mrb[0].mxu0
  %580 = vdwg.mxu0
  %v581 = vadd.f32 %v510, %v578
  %v582 = vtanh.pop %v581
  %583 = vmatprep.subr.mxu0 0.0
  %584 = vmatpush1.msra.mxu0 %v52
  %585 = vmatprep.subr.mxu0 0.0
  %586 = vmatpush1.msra.mxu0 %v53
  %587 = vmatprep.subr.mxu0 0.0
  %588 = vmatpush1.msra.mxu0 %v54
  %589 = vmatprep.subr.mxu0 0.0
  %590 = vmatpush1.msra.mxu0 %v55
  %591 = vmatprep.subr.mxu0 0.0
  %592 = vmatpush1.msra.mxu0 %v56
  %593 = vmatprep.subr.mxu0 0.0
  %594 = vmatpush1.msra.mxu0 %v57
  %595 = vmatprep.subr.mxu0 0.0
  %596 = vmatpush1.msra.mxu0 %v58
  %597 = vmatprep.subr.mxu0 0.0
  %598 = vmatpush1.msra.mxu0 %v59
  %599 = vmatprep.subr.mxu0 0.0
  %600 = vmatpush1.msra.mxu0 %v60
  %601 = vmatprep.subr.mxu0 0.0
  %602 = vmatpush1.msra.mxu0 %v61
  %603 = vmatprep.subr.mxu0 0.0
  %604 = vmatpush1.msra.mxu0 %v62
  %605 = vmatprep.subr.mxu0 0.0
  %606 = vmatpush1.msra.mxu0 %v63
  %607 = vmatprep.subr.mxu0 0.0
  %608 = vmatpush1.msra.mxu0 %v64
  %609 = vmatprep.subr.mxu0 0.0
  %610 = vmatpush1.msra.mxu0 %v65
  %611 = vmatprep.subr.mxu0 0.0
  %612 = vmatpush1.msra.mxu0 %v66
  %613 = vmatprep.subr.mxu0 0.0
  %614 = vmatpush1.msra.mxu0 %v67
  %615 = vmatprep.subr.mxu0 0.0
  %616 = vmatpush1.msra.mxu0 0.0
  %617 = vmatprep.subr.mxu0 0.0
  %618 = vmatpush1.msra.mxu0 0.0
  %619 = vmatprep.subr.mxu0 0.0
  %620 = vmatpush1.msra.mxu0 0.0
  %621 = vmatprep.subr.mxu0 0.0
  %622 = vmatpush1.msra.mxu0 0.0
  %623 = vmatprep.subr.mxu0 0.0
  %624 = vmatpush1.msra.mxu0 0.0
  %625 = vmatprep.subr.mxu0 0.0
  %626 = vmatpush1.msra.mxu0 0.0
  %627 = vmatprep.subr.mxu0 0.0
  %628 = vmatpush1.msra.mxu0 0.0
  %629 = vmatprep.subr.mxu0 0.0
  %630 = vmatpush1.msra.mxu0 0.0
  %631 = vmatprep.subr.mxu0 0.0
  %632 = vmatpush1.msra.mxu0 0.0
  %633 = vmatprep.subr.mxu0 0.0
  %634 = vmatpush1.msra.mxu0 0.0
  %635 = vmatprep.subr.mxu0 0.0
  %636 = vmatpush1.msra.mxu0 0.0
  %637 = vmatprep.subr.mxu0 0.0
  %638 = vmatpush1.msra.mxu0 0.0
  %639 = vmatprep.subr.mxu0 0.0
  %640 = vmatpush1.msra.mxu0 0.0
  %641 = vmatprep.subr.mxu0 0.0
  %642 = vmatpush1.msra.mxu0 0.0
  %643 = vmatprep.subr.mxu0 0.0
  %644 = vmatpush1.msra.mxu0 0.0
  %645 = vmatprep.subr.mxu0 0.0
  %646 = vmatpush1.msra.mxu0 0.0
  %647 = vmatprep.mubr.f32.mxu0 0.0
  %648 = vmatmul.mubr.f32.gmra.mrb[0].mxu0 %v506
  %v649 = vpop.f32.mrb[0].mxu0
  %v650 = vadd.f32 0.0, %v649
  %v651 = vpop.f32.mrb[0].mxu0
  %652 = vdwg.mxu0
  %653 = vmatprep.subr.mxu0 0.0
  %654 = vmatpush1.msra.mxu0 %v36
  %655 = vmatprep.subr.mxu0 0.0
  %656 = vmatpush1.msra.mxu0 %v37
  %657 = vmatprep.subr.mxu0 0.0
  %658 = vmatpush1.msra.mxu0 %v38
  %659 = vmatprep.subr.mxu0 0.0
  %660 = vmatpush1.msra.mxu0 %v39
  %661 = vmatprep.subr.mxu0 0.0
  %662 = vmatpush1.msra.mxu0 %v40
  %663 = vmatprep.subr.mxu0 0.0
  %664 = vmatpush1.msra.mxu0 %v41
  %665 = vmatprep.subr.mxu0 0.0
  %666 = vmatpush1.msra.mxu0 %v42
  %667 = vmatprep.subr.mxu0 0.0
  %668 = vmatpush1.msra.mxu0 %v43
  %669 = vmatprep.subr.mxu0 0.0
  %670 = vmatpush1.msra.mxu0 %v44
  %671 = vmatprep.subr.mxu0 0.0
  %672 = vmatpush1.msra.mxu0 %v45
  %673 = vmatprep.subr.mxu0 0.0
  %674 = vmatpush1.msra.mxu0 %v46
  %675 = vmatprep.subr.mxu0 0.0
  %676 = vmatpush1.msra.mxu0 %v47
  %677 = vmatprep.subr.mxu0 0.0
  %678 = vmatpush1.msra.mxu0 %v48
  %679 = vmatprep.subr.mxu0 0.0
  %680 = vmatpush1.msra.mxu0 %v49
  %681 = vmatprep.subr.mxu0 0.0
  %682 = vmatpush1.msra.mxu0 %v50
  %683 = vmatprep.subr.mxu0 0.0
  %684 = vmatpush1.msra.mxu0 %v51
  %685 = vmatprep.subr.mxu0 0.0
  %686 = vmatpush1.msra.mxu0 0.0
  %687 = vmatprep.subr.mxu0 0.0
  %688 = vmatpush1.msra.mxu0 0.0
  %689 = vmatprep.subr.mxu0 0.0
  %690 = vmatpush1.msra.mxu0 0.0
  %691 = vmatprep.subr.mxu0 0.0
  %692 = vmatpush1.msra.mxu0 0.0
  %693 = vmatprep.subr.mxu0 0.0
  %694 = vmatpush1.msra.mxu0 0.0
  %695 = vmatprep.subr.mxu0 0.0
  %696 = vmatpush1.msra.mxu0 0.0
  %697 = vmatprep.subr.mxu0 0.0
  %698 = vmatpush1.msra.mxu0 0.0
  %699 = vmatprep.subr.mxu0 0.0
  %700 = vmatpush1.msra.mxu0 0.0
  %701 = vmatprep.subr.mxu0 0.0
  %702 = vmatpush1.msra.mxu0 0.0
  %703 = vmatprep.subr.mxu0 0.0
  %704 = vmatpush1.msra.mxu0 0.0
  %705 = vmatprep.subr.mxu0 0.0
  %706 = vmatpush1.msra.mxu0 0.0
  %707 = vmatprep.subr.mxu0 0.0
  %708 = vmatpush1.msra.mxu0 0.0
  %709 = vmatprep.subr.mxu0 0.0
  %710 = vmatpush1.msra.mxu0 0.0
  %711 = vmatprep.subr.mxu0 0.0
  %712 = vmatpush1.msra.mxu0 0.0
  %713 = vmatprep.subr.mxu0 0.0
  %714 = vmatpush1.msra.mxu0 0.0
  %715 = vmatprep.subr.mxu0 0.0
  %716 = vmatpush1.msra.mxu0 0.0
  %717 = vmatprep.mubr.f32.mxu0 0.0
  %718 = vmatmul.mubr.f32.gmra.mrb[0].mxu0 %v582
  %v719 = vpop.f32.mrb[0].mxu0
  %v720 = vadd.f32 %v650, %v719
  %v721 = vpop.f32.mrb[0].mxu0
  %722 = vdwg.mxu0
  %v723 = vadd.f32 %v720, %v286
  %v724 = vtanh.pop %v723
  %s725 = scalar_lea.vmem %s5, 16
  %726 = vst [vmem:[%s725] sm:$0xff] %v724
  %s727 = scalar_lea.vmem %s0, 24
  %v728 = vld [vmem:[%s727] sm:$0xff]
  %729 = vmatprep.subr.mxu0 0.0
  %730 = vmatpush1.msra.mxu0 %v20
  %731 = vmatprep.subr.mxu0 0.0
  %732 = vmatpush1.msra.mxu0 %v21
  %733 = vmatprep.subr.mxu0 0.0
  %734 = vmatpush1.msra.mxu0 %v22
  %735 = vmatprep.subr.mxu0 0.0
  %736 = vmatpush1.msra.mxu0 %v23
  %737 = vmatprep.subr.mxu0 0.0
  %738 = vmatpush1.msra.mxu0 %v24
  %739 = vmatprep.subr.mxu0 0.0
  %740 = vmatpush1.msra.mxu0 %v25
  %741 = vmatprep.subr.mxu0 0.0
  %742 = vmatpush1.msra.mxu0 %v26
  %743 = vmatprep.subr.mxu0 0.0
  %744 = vmatpush1.msra.mxu0 %v27
  %745 = vmatprep.subr.mxu0 0.0
  %746 = vmatpush1.msra.mxu0 %v28
  %747 = vmatprep.subr.mxu0 0.0
  %748 = vmatpush1.msra.mxu0 %v29
  %749 = vmatprep.subr.mxu0 0.0
  %750 = vmatpush1.msra.mxu0 %v30
  %751 = vmatprep.subr.mxu0 0.0
  %752 = vmatpush1.msra.mxu0 %v31
  %753 = vmatprep.subr.mxu0 0.0
  %754 = vmatpush1.msra.mxu0 %v32
  %755 = vmatprep.subr.mxu0 0.0
  %756 = vmatpush1.msra.mxu0 %v33
  %757 = vmatprep.subr.mxu0 0.0
  %758 = vmatpush1.msra.mxu0 %v34
  %759 = vmatprep.subr.mxu0 0.0
  %760 = vmatpush1.msra.mxu0 %v35
  %761 = vmatprep.subr.mxu0 0.0
  %762 = vmatpush1.msra.mxu0 0.0
  %763 = vmatprep.subr.mxu0 0.0
  %764 = vmatpush1.msra.mxu0 0.0
  %765 = vmatprep.subr.mxu0 0.0
  %766 = vmatpush1.msra.mxu0 0.0
  %767 = vmatprep.subr.mxu0 0.0
  %768 = vmatpush1.msra.mxu0 0.0
  %769 = vmatprep.subr.mxu0 0.0
  %770 = vmatpush1.msra.mxu0 0.0
  %771 = vmatprep.subr.mxu0 0.0
  %772 = vmatpush1.msra.mxu0 0.0
  %773 = vmatprep.subr.mxu0 0.0
  %774 = vmatpush1.msra.mxu0 0.0
  %775 = vmatprep.subr.mxu0 0.0
  %776 = vmatpush1.msra.mxu0 0.0
  %777 = vmatprep.subr.mxu0 0.0
  %778 = vmatpush1.msra.mxu0 0.0
  %779 = vmatprep.subr.mxu0 0.0
  %780 = vmatpush1.msra.mxu0 0.0
  %781 = vmatprep.subr.mxu0 0.0
  %782 = vmatpush1.msra.mxu0 0.0
  %783 = vmatprep.subr.mxu0 0.0
  %784 = vmatpush1.msra.mxu0 0.0
  %785 = vmatprep.subr.mxu0 0.0
  %786 = vmatpush1.msra.mxu0 0.0
  %787 = vmatprep.subr.mxu0 0.0
  %788 = vmatpush1.msra.mxu0 0.0
  %789 = vmatprep.subr.mxu0 0.0
  %790 = vmatpush1.msra.mxu0 0.0
  %791 = vmatprep.subr.mxu0 0.0
  %792 = vmatpush1.msra.mxu0 0.0
  %793 = vmatprep.mubr.f32.mxu0 0.0
  %794 = vmatmul.mubr.f32.gmra.mrb[0].mxu0 %v582
  %v795 = vpop.f32.mrb[0].mxu0
  %v796 = vadd.f32 0.0, %v795
  %v797 = vpop.f32.mrb[0].mxu0
  %798 = vdwg.mxu0
  %v799 = vadd.f32 %v728, %v796
  %v800 = vtanh.pop %v799
  %801 = vmatprep.subr.mxu0 0.0
  %802 = vmatpush1.msra.mxu0 %v52
  %803 = vmatprep.subr.mxu0 0.0
  %804 = vmatpush1.msra.mxu0 %v53
  %805 = vmatprep.subr.mxu0 0.0
  %806 = vmatpush1.msra.mxu0 %v54
  %807 = vmatprep.subr.mxu0 0.0
  %808 = vmatpush1.msra.mxu0 %v55
  %809 = vmatprep.subr.mxu0 0.0
  %810 = vmatpush1.msra.mxu0 %v56
  %811 = vmatprep.subr.mxu0 0.0
  %812 = vmatpush1.msra.mxu0 %v57
  %813 = vmatprep.subr.mxu0 0.0
  %814 = vmatpush1.msra.mxu0 %v58
  %815 = vmatprep.subr.mxu0 0.0
  %816 = vmatpush1.msra.mxu0 %v59
  %817 = vmatprep.subr.mxu0 0.0
  %818 = vmatpush1.msra.mxu0 %v60
  %819 = vmatprep.subr.mxu0 0.0
  %820 = vmatpush1.msra.mxu0 %v61
  %821 = vmatprep.subr.mxu0 0.0
  %822 = vmatpush1.msra.mxu0 %v62
  %823 = vmatprep.subr.mxu0 0.0
  %824 = vmatpush1.msra.mxu0 %v63
  %825 = vmatprep.subr.mxu0 0.0
  %826 = vmatpush1.msra.mxu0 %v64
  %827 = vmatprep.subr.mxu0 0.0
  %828 = vmatpush1.msra.mxu0 %v65
  %829 = vmatprep.subr.mxu0 0.0
  %830 = vmatpush1.msra.mxu0 %v66
  %831 = vmatprep.subr.mxu0 0.0
  %832 = vmatpush1.msra.mxu0 %v67
  %833 = vmatprep.subr.mxu0 0.0
  %834 = vmatpush1.msra.mxu0 0.0
  %835 = vmatprep.subr.mxu0 0.0
  %836 = vmatpush1.msra.mxu0 0.0
  %837 = vmatprep.subr.mxu0 0.0
  %838 = vmatpush1.msra.mxu0 0.0
  %839 = vmatprep.subr.mxu0 0.0
  %840 = vmatpush1.msra.mxu0 0.0
  %841 = vmatprep.subr.mxu0 0.0
  %842 = vmatpush1.msra.mxu0 0.0
  %843 = vmatprep.subr.mxu0 0.0
  %844 = vmatpush1.msra.mxu0 0.0
  %845 = vmatprep.subr.mxu0 0.0
  %846 = vmatpush1.msra.mxu0 0.0
  %847 = vmatprep.subr.mxu0 0.0
  %848 = vmatpush1.msra.mxu0 0.0
  %849 = vmatprep.subr.mxu0 0.0
  %850 = vmatpush1.msra.mxu0 0.0
  %851 = vmatprep.subr.mxu0 0.0
  %852 = vmatpush1.msra.mxu0 0.0
  %853 = vmatprep.subr.mxu0 0.0
  %854 = vmatpush1.msra.mxu0 0.0
  %855 = vmatprep.subr.mxu0 0.0
  %856 = vmatpush1.msra.mxu0 0.0
  %857 = vmatprep.subr.mxu0 0.0
  %858 = vmatpush1.msra.mxu0 0.0
  %859 = vmatprep.subr.mxu0 0.0
  %860 = vmatpush1.msra.mxu0 0.0
  %861 = vmatprep.subr.mxu0 0.0
  %862 = vmatpush1.msra.mxu0 0.0
  %863 = vmatprep.subr.mxu0 0.0
  %864 = vmatpush1.msra.mxu0 0.0
  %865 = vmatprep.mubr.f32.mxu0 0.0
  %866 = vmatmul.mubr.f32.gmra.mrb[0].mxu0 %v724
  %v867 = vpop.f32.mrb[0].mxu0
  %v868 = vadd.f32 0.0, %v867
  %v869 = vpop.f32.mrb[0].mxu0
  %870 = vdwg.mxu0
  %871 = vmatprep.subr.mxu0 0.0
  %872 = vmatpush1.msra.mxu0 %v36
  %873 = vmatprep.subr.mxu0 0.0
  %874 = vmatpush1.msra.mxu0 %v37
  %875 = vmatprep.subr.mxu0 0.0
  %876 = vmatpush1.msra.mxu0 %v38
  %877 = vmatprep.subr.mxu0 0.0
  %878 = vmatpush1.msra.mxu0 %v39
  %879 = vmatprep.subr.mxu0 0.0
  %880 = vmatpush1.msra.mxu0 %v40
  %881 = vmatprep.subr.mxu0 0.0
  %882 = vmatpush1.msra.mxu0 %v41
  %883 = vmatprep.subr.mxu0 0.0
  %884 = vmatpush1.msra.mxu0 %v42
  %885 = vmatprep.subr.mxu0 0.0
  %886 = vmatpush1.msra.mxu0 %v43
  %887 = vmatprep.subr.mxu0 0.0
  %888 = vmatpush1.msra.mxu0 %v44
  %889 = vmatprep.subr.mxu0 0.0
  %890 = vmatpush1.msra.mxu0 %v45
  %891 = vmatprep.subr.mxu0 0.0
  %892 = vmatpush1.msra.mxu0 %v46
  %893 = vmatprep.subr.mxu0 0.0
  %894 = vmatpush1.msra.mxu0 %v47
  %895 = vmatprep.subr.mxu0 0.0
  %896 = vmatpush1.msra.mxu0 %v48
  %897 = vmatprep.subr.mxu0 0.0
  %898 = vmatpush1.msra.mxu0 %v49
  %899 = vmatprep.subr.mxu0 0.0
  %900 = vmatpush1.msra.mxu0 %v50
  %901 = vmatprep.subr.mxu0 0.0
  %902 = vmatpush1.msra.mxu0 %v51
  %903 = vmatprep.subr.mxu0 0.0
  %904 = vmatpush1.msra.mxu0 0.0
  %905 = vmatprep.subr.mxu0 0.0
  %906 = vmatpush1.msra.mxu0 0.0
  %907 = vmatprep.subr.mxu0 0.0
  %908 = vmatpush1.msra.mxu0 0.0
  %909 = vmatprep.subr.mxu0 0.0
  %910 = vmatpush1.msra.mxu0 0.0
  %911 = vmatprep.subr.mxu0 0.0
  %912 = vmatpush1.msra.mxu0 0.0
  %913 = vmatprep.subr.mxu0 0.0
  %914 = vmatpush1.msra.mxu0 0.0
  %915 = vmatprep.subr.mxu0 0.0
  %916 = vmatpush1.msra.mxu0 0.0
  %917 = vmatprep.subr.mxu0 0.0
  %918 = vmatpush1.msra.mxu0 0.0
  %919 = vmatprep.subr.mxu0 0.0
  %920 = vmatpush1.msra.mxu0 0.0
  %921 = vmatprep.subr.mxu0 0.0
  %922 = vmatpush1.msra.mxu0 0.0
  %923 = vmatprep.subr.mxu0 0.0
  %924 = vmatpush1.msra.mxu0 0.0
  %925 = vmatprep.subr.mxu0 0.0
  %926 = vmatpush1.msra.mxu0 0.0
  %927 = vmatprep.subr.mxu0 0.0
  %928 = vmatpush1.msra.mxu0 0.0
  %929 = vmatprep.subr.mxu0 0.0
  %930 = vmatpush1.msra.mxu0 0.0
  %931 = vmatprep.subr.mxu0 0.0
  %932 = vmatpush1.msra.mxu0 0.0
  %933 = vmatprep.subr.mxu0 0.0
  %934 = vmatpush1.msra.mxu0 0.0
  %935 = vmatprep.mubr.f32.mxu0 0.0
  %936 = vmatmul.mubr.f32.gmra.mrb[0].mxu0 %v800
  %v937 = vpop.f32.mrb[0].mxu0
  %v938 = vadd.f32 %v868, %v937
  %v939 = vpop.f32.mrb[0].mxu0
  %940 = vdwg.mxu0
  %v941 = vadd.f32 %v938, %v286
  %v942 = vtanh.pop %v941
  %s943 = scalar_lea.vmem %s5, 24
  %944 = vst [vmem:[%s943] sm:$0xff] %v942
  %s945 = scalar_lea.vmem %s0, 32
  %v946 = vld [vmem:[%s945] sm:$0xff]
  %947 = vmatprep.subr.mxu0 0.0
  %948 = vmatpush1.msra.mxu0 %v20
  %949 = vmatprep.subr.mxu0 0.0
  %950 = vmatpush1.msra.mxu0 %v21
  %951 = vmatprep.subr.mxu0 0.0
  %952 = vmatpush1.msra.mxu0 %v22
  %953 = vmatprep.subr.mxu0 0.0
  %954 = vmatpush1.msra.mxu0 %v23
  %955 = vmatprep.subr.mxu0 0.0
  %956 = vmatpush1.msra.mxu0 %v24
  %957 = vmatprep.subr.mxu0 0.0
  %958 = vmatpush1.msra.mxu0 %v25
  %959 = vmatprep.subr.mxu0 0.0
  %960 = vmatpush1.msra.mxu0 %v26
  %961 = vmatprep.subr.mxu0 0.0
  %962 = vmatpush1.msra.mxu0 %v27
  %963 = vmatprep.subr.mxu0 0.0
  %964 = vmatpush1.msra.mxu0 %v28
  %965 = vmatprep.subr.mxu0 0.0
  %966 = vmatpush1.msra.mxu0 %v29
  %967 = vmatprep.subr.mxu0 0.0
  %968 = vmatpush1.msra.mxu0 %v30
  %969 = vmatprep.subr.mxu0 0.0
  %970 = vmatpush1.msra.mxu0 %v31
  %971 = vmatprep.subr.mxu0 0.0
  %972 = vmatpush1.msra.mxu0 %v32
  %973 = vmatprep.subr.mxu0 0.0
  %974 = vmatpush1.msra.mxu0 %v33
  %975 = vmatprep.subr.mxu0 0.0
  %976 = vmatpush1.msra.mxu0 %v34
  %977 = vmatprep.subr.mxu0 0.0
  %978 = vmatpush1.msra.mxu0 %v35
  %979 = vmatprep.subr.mxu0 0.0
  %980 = vmatpush1.msra.mxu0 0.0
  %981 = vmatprep.subr.mxu0 0.0
  %982 = vmatpush1.msra.mxu0 0.0
  %983 = vmatprep.subr.mxu0 0.0
  %984 = vmatpush1.msra.mxu0 0.0
  %985 = vmatprep.subr.mxu0 0.0
  %986 = vmatpush1.msra.mxu0 0.0
  %987 = vmatprep.subr.mxu0 0.0
  %988 = vmatpush1.msra.mxu0 0.0
  %989 = vmatprep.subr.mxu0 0.0
  %990 = vmatpush1.msra.mxu0 0.0
  %991 = vmatprep.subr.mxu0 0.0
  %992 = vmatpush1.msra.mxu0 0.0
  %993 = vmatprep.subr.mxu0 0.0
  %994 = vmatpush1.msra.mxu0 0.0
  %995 = vmatprep.subr.mxu0 0.0
  %996 = vmatpush1.msra.mxu0 0.0
  %997 = vmatprep.subr.mxu0 0.0
  %998 = vmatpush1.msra.mxu0 0.0
  %999 = vmatprep.subr.mxu0 0.0
  %1000 = vmatpush1.msra.mxu0 0.0
  %1001 = vmatprep.subr.mxu0 0.0
  %1002 = vmatpush1.msra.mxu0 0.0
  %1003 = vmatprep.subr.mxu0 0.0
  %1004 = vmatpush1.msra.mxu0 0.0
  %1005 = vmatprep.subr.mxu0 0.0
  %1006 = vmatpush1.msra.mxu0 0.0
  %1007 = vmatprep.subr.mxu0 0.0
  %1008 = vmatpush1.msra.mxu0 0.0
  %1009 = vmatprep.subr.mxu0 0.0
  %1010 = vmatpush1.msra.mxu0 0.0
  %1011 = vmatprep.mubr.f32.mxu0 0.0
  %1012 = vmatmul.mubr.f32.gmra.mrb[0].mxu0 %v800
  %v1013 = vpop.f32.mrb[0].mxu0
  %v1014 = vadd.f32 0.0, %v1013
  %v1015 = vpop.f32.mrb[0].mxu0
  %1016 = vdwg.mxu0
  %v1017 = vadd.f32 %v946, %v1014
  %v1018 = vtanh.pop %v1017
  %1019 = vmatprep.subr.mxu0 0.0
  %1020 = vmatpush1.msra.mxu0 %v52
  %1021 = vmatprep.subr.mxu0 0.0
  %1022 = vmatpush1.msra.mxu0 %v53
  %1023 = vmatprep.subr.mxu0 0.0
  %1024 = vmatpush1.msra.mxu0 %v54
  %1025 = vmatprep.subr.mxu0 0.0
  %1026 = vmatpush1.msra.mxu0 %v55
  %1027 = vmatprep.subr.mxu0 0.0
  %1028 = vmatpush1.msra.mxu0 %v56
  %1029 = vmatprep.subr.mxu0 0.0
  %1030 = vmatpush1.msra.mxu0 %v57
  %1031 = vmatprep.subr.mxu0 0.0
  %1032 = vmatpush1.msra.mxu0 %v58
  %1033 = vmatprep.subr.mxu0 0.0
  %1034 = vmatpush1.msra.mxu0 %v59
  %1035 = vmatprep.subr.mxu0 0.0
  %1036 = vmatpush1.msra.mxu0 %v60
  %1037 = vmatprep.subr.mxu0 0.0
  %1038 = vmatpush1.msra.mxu0 %v61
  %1039 = vmatprep.subr.mxu0 0.0
  %1040 = vmatpush1.msra.mxu0 %v62
  %1041 = vmatprep.subr.mxu0 0.0
  %1042 = vmatpush1.msra.mxu0 %v63
  %1043 = vmatprep.subr.mxu0 0.0
  %1044 = vmatpush1.msra.mxu0 %v64
  %1045 = vmatprep.subr.mxu0 0.0
  %1046 = vmatpush1.msra.mxu0 %v65
  %1047 = vmatprep.subr.mxu0 0.0
  %1048 = vmatpush1.msra.mxu0 %v66
  %1049 = vmatprep.subr.mxu0 0.0
  %1050 = vmatpush1.msra.mxu0 %v67
  %1051 = vmatprep.subr.mxu0 0.0
  %1052 = vmatpush1.msra.mxu0 0.0
  %1053 = vmatprep.subr.mxu0 0.0
  %1054 = vmatpush1.msra.mxu0 0.0
  %1055 = vmatprep.subr.mxu0 0.0
  %1056 = vmatpush1.msra.mxu0 0.0
  %1057 = vmatprep.subr.mxu0 0.0
  %1058 = vmatpush1.msra.mxu0 0.0
  %1059 = vmatprep.subr.mxu0 0.0
  %1060 = vmatpush1.msra.mxu0 0.0
  %1061 = vmatprep.subr.mxu0 0.0
  %1062 = vmatpush1.msra.mxu0 0.0
  %1063 = vmatprep.subr.mxu0 0.0
  %1064 = vmatpush1.msra.mxu0 0.0
  %1065 = vmatprep.subr.mxu0 0.0
  %1066 = vmatpush1.msra.mxu0 0.0
  %1067 = vmatprep.subr.mxu0 0.0
  %1068 = vmatpush1.msra.mxu0 0.0
  %1069 = vmatprep.subr.mxu0 0.0
  %1070 = vmatpush1.msra.mxu0 0.0
  %1071 = vmatprep.subr.mxu0 0.0
  %1072 = vmatpush1.msra.mxu0 0.0
  %1073 = vmatprep.subr.mxu0 0.0
  %1074 = vmatpush1.msra.mxu0 0.0
  %1075 = vmatprep.subr.mxu0 0.0
  %1076 = vmatpush1.msra.mxu0 0.0
  %1077 = vmatprep.subr.mxu0 0.0
  %1078 = vmatpush1.msra.mxu0 0.0
  %1079 = vmatprep.subr.mxu0 0.0
  %1080 = vmatpush1.msra.mxu0 0.0
  %1081 = vmatprep.subr.mxu0 0.0
  %1082 = vmatpush1.msra.mxu0 0.0
  %1083 = vmatprep.mubr.f32.mxu0 0.0
  %1084 = vmatmul.mubr.f32.gmra.mrb[0].mxu0 %v942
  %v1085 = vpop.f32.mrb[0].mxu0
  %v1086 = vadd.f32 0.0, %v1085
  %v1087 = vpop.f32.mrb[0].mxu0
  %1088 = vdwg.mxu0
  %1089 = vmatprep.subr.mxu0 0.0
  %1090 = vmatpush1.msra.mxu0 %v36
  %1091 = vmatprep.subr.mxu0 0.0
  %1092 = vmatpush1.msra.mxu0 %v37
  %1093 = vmatprep.subr.mxu0 0.0
  %1094 = vmatpush1.msra.mxu0 %v38
  %1095 = vmatprep.subr.mxu0 0.0
  %1096 = vmatpush1.msra.mxu0 %v39
  %1097 = vmatprep.subr.mxu0 0.0
  %1098 = vmatpush1.msra.mxu0 %v40
  %1099 = vmatprep.subr.mxu0 0.0
  %1100 = vmatpush1.msra.mxu0 %v41
  %1101 = vmatprep.subr.mxu0 0.0
  %1102 = vmatpush1.msra.mxu0 %v42
  %1103 = vmatprep.subr.mxu0 0.0
  %1104 = vmatpush1.msra.mxu0 %v43
  %1105 = vmatprep.subr.mxu0 0.0
  %1106 = vmatpush1.msra.mxu0 %v44
  %1107 = vmatprep.subr.mxu0 0.0
  %1108 = vmatpush1.msra.mxu0 %v45
  %1109 = vmatprep.subr.mxu0 0.0
  %1110 = vmatpush1.msra.mxu0 %v46
  %1111 = vmatprep.subr.mxu0 0.0
  %1112 = vmatpush1.msra.mxu0 %v47
  %1113 = vmatprep.subr.mxu0 0.0
  %1114 = vmatpush1.msra.mxu0 %v48
  %1115 = vmatprep.subr.mxu0 0.0
  %1116 = vmatpush1.msra.mxu0 %v49
  %1117 = vmatprep.subr.mxu0 0.0
  %1118 = vmatpush1.msra.mxu0 %v50
  %1119 = vmatprep.subr.mxu0 0.0
  %1120 = vmatpush1.msra.mxu0 %v51
  %1121 = vmatprep.subr.mxu0 0.0
  %1122 = vmatpush1.msra.mxu0 0.0
  %1123 = vmatprep.subr.mxu0 0.0
  %1124 = vmatpush1.msra.mxu0 0.0
  %1125 = vmatprep.subr.mxu0 0.0
  %1126 = vmatpush1.msra.mxu0 0.0
  %1127 = vmatprep.subr.mxu0 0.0
  %1128 = vmatpush1.msra.mxu0 0.0
  %1129 = vmatprep.subr.mxu0 0.0
  %1130 = vmatpush1.msra.mxu0 0.0
  %1131 = vmatprep.subr.mxu0 0.0
  %1132 = vmatpush1.msra.mxu0 0.0
  %1133 = vmatprep.subr.mxu0 0.0
  %1134 = vmatpush1.msra.mxu0 0.0
  %1135 = vmatprep.subr.mxu0 0.0
  %1136 = vmatpush1.msra.mxu0 0.0
  %1137 = vmatprep.subr.mxu0 0.0
  %1138 = vmatpush1.msra.mxu0 0.0
  %1139 = vmatprep.subr.mxu0 0.0
  %1140 = vmatpush1.msra.mxu0 0.0
  %1141 = vmatprep.subr.mxu0 0.0
  %1142 = vmatpush1.msra.mxu0 0.0
  %1143 = vmatprep.subr.mxu0 0.0
  %1144 = vmatpush1.msra.mxu0 0.0
  %1145 = vmatprep.subr.mxu0 0.0
  %1146 = vmatpush1.msra.mxu0 0.0
  %1147 = vmatprep.subr.mxu0 0.0
  %1148 = vmatpush1.msra.mxu0 0.0
  %1149 = vmatprep.subr.mxu0 0.0
  %1150 = vmatpush1.msra.mxu0 0.0
  %1151 = vmatprep.subr.mxu0 0.0
  %1152 = vmatpush1.msra.mxu0 0.0
  %1153 = vmatprep.mubr.f32.mxu0 0.0
  %1154 = vmatmul.mubr.f32.gmra.mrb[0].mxu0 %v1018
  %v1155 = vpop.f32.mrb[0].mxu0
  %v1156 = vadd.f32 %v1086, %v1155
  %v1157 = vpop.f32.mrb[0].mxu0
  %1158 = vdwg.mxu0
  %v1159 = vadd.f32 %v1156, %v286
  %v1160 = vtanh.pop %v1159
  %s1161 = scalar_lea.vmem %s5, 32
  %1162 = vst [vmem:[%s1161] sm:$0xff] %v1160
  %s1163 = scalar_lea.vmem %s0, 40
  %v1164 = vld [vmem:[%s1163] sm:$0xff]
  %1165 = vmatprep.subr.mxu0 0.0
  %1166 = vmatpush1.msra.mxu0 %v20
  %1167 = vmatprep.subr.mxu0 0.0
  %1168 = vmatpush1.msra.mxu0 %v21
  %1169 = vmatprep.subr.mxu0 0.0
  %1170 = vmatpush1.msra.mxu0 %v22
  %1171 = vmatprep.subr.mxu0 0.0
  %1172 = vmatpush1.msra.mxu0 %v23
  %1173 = vmatprep.subr.mxu0 0.0
  %1174 = vmatpush1.msra.mxu0 %v24
  %1175 = vmatprep.subr.mxu0 0.0
  %1176 = vmatpush1.msra.mxu0 %v25
  %1177 = vmatprep.subr.mxu0 0.0
  %1178 = vmatpush1.msra.mxu0 %v26
  %1179 = vmatprep.subr.mxu0 0.0
  %1180 = vmatpush1.msra.mxu0 %v27
  %1181 = vmatprep.subr.mxu0 0.0
  %1182 = vmatpush1.msra.mxu0 %v28
  %1183 = vmatprep.subr.mxu0 0.0
  %1184 = vmatpush1.msra.mxu0 %v29
  %1185 = vmatprep.subr.mxu0 0.0
  %1186 = vmatpush1.msra.mxu0 %v30
  %1187 = vmatprep.subr.mxu0 0.0
  %1188 = vmatpush1.msra.mxu0 %v31
  %1189 = vmatprep.subr.mxu0 0.0
  %1190 = vmatpush1.msra.mxu0 %v32
  %1191 = vmatprep.subr.mxu0 0.0
  %1192 = vmatpush1.msra.mxu0 %v33
  %1193 = vmatprep.subr.mxu0 0.0
  %1194 = vmatpush1.msra.mxu0 %v34
  %1195 = vmatprep.subr.mxu0 0.0
  %1196 = vmatpush1.msra.mxu0 %v35
  %1197 = vmatprep.subr.mxu0 0.0
  %1198 = vmatpush1.msra.mxu0 0.0
  %1199 = vmatprep.subr.mxu0 0.0
  %1200 = vmatpush1.msra.mxu0 0.0
  %1201 = vmatprep.subr.mxu0 0.0
  %1202 = vmatpush1.msra.mxu0 0.0
  %1203 = vmatprep.subr.mxu0 0.0
  %1204 = vmatpush1.msra.mxu0 0.0
  %1205 = vmatprep.subr.mxu0 0.0
  %1206 = vmatpush1.msra.mxu0 0.0
  %1207 = vmatprep.subr.mxu0 0.0
  %1208 = vmatpush1.msra.mxu0 0.0
  %1209 = vmatprep.subr.mxu0 0.0
  %1210 = vmatpush1.msra.mxu0 0.0
  %1211 = vmatprep.subr.mxu0 0.0
  %1212 = vmatpush1.msra.mxu0 0.0
  %1213 = vmatprep.subr.mxu0 0.0
  %1214 = vmatpush1.msra.mxu0 0.0
  %1215 = vmatprep.subr.mxu0 0.0
  %1216 = vmatpush1.msra.mxu0 0.0
  %1217 = vmatprep.subr.mxu0 0.0
  %1218 = vmatpush1.msra.mxu0 0.0
  %1219 = vmatprep.subr.mxu0 0.0
  %1220 = vmatpush1.msra.mxu0 0.0
  %1221 = vmatprep.subr.mxu0 0.0
  %1222 = vmatpush1.msra.mxu0 0.0
  %1223 = vmatprep.subr.mxu0 0.0
  %1224 = vmatpush1.msra.mxu0 0.0
  %1225 = vmatprep.subr.mxu0 0.0
  %1226 = vmatpush1.msra.mxu0 0.0
  %1227 = vmatprep.subr.mxu0 0.0
  %1228 = vmatpush1.msra.mxu0 0.0
  %1229 = vmatprep.mubr.f32.mxu0 0.0
  %1230 = vmatmul.mubr.f32.gmra.mrb[0].mxu0 %v1018
  %v1231 = vpop.f32.mrb[0].mxu0
  %v1232 = vadd.f32 0.0, %v1231
  %v1233 = vpop.f32.mrb[0].mxu0
  %1234 = vdwg.mxu0
  %v1235 = vadd.f32 %v1164, %v1232
  %v1236 = vtanh.pop %v1235
  %1237 = vmatprep.subr.mxu0 0.0
  %1238 = vmatpush1.msra.mxu0 %v52
  %1239 = vmatprep.subr.mxu0 0.0
  %1240 = vmatpush1.msra.mxu0 %v53
  %1241 = vmatprep.subr.mxu0 0.0
  %1242 = vmatpush1.msra.mxu0 %v54
  %1243 = vmatprep.subr.mxu0 0.0
  %1244 = vmatpush1.msra.mxu0 %v55
  %1245 = vmatprep.subr.mxu0 0.0
  %1246 = vmatpush1.msra.mxu0 %v56
  %1247 = vmatprep.subr.mxu0 0.0
  %1248 = vmatpush1.msra.mxu0 %v57
  %1249 = vmatprep.subr.mxu0 0.0
  %1250 = vmatpush1.msra.mxu0 %v58
  %1251 = vmatprep.subr.mxu0 0.0
  %1252 = vmatpush1.msra.mxu0 %v59
  %1253 = vmatprep.subr.mxu0 0.0
  %1254 = vmatpush1.msra.mxu0 %v60
  %1255 = vmatprep.subr.mxu0 0.0
  %1256 = vmatpush1.msra.mxu0 %v61
  %1257 = vmatprep.subr.mxu0 0.0
  %1258 = vmatpush1.msra.mxu0 %v62
  %1259 = vmatprep.subr.mxu0 0.0
  %1260 = vmatpush1.msra.mxu0 %v63
  %1261 = vmatprep.subr.mxu0 0.0
  %1262 = vmatpush1.msra.mxu0 %v64
  %1263 = vmatprep.subr.mxu0 0.0
  %1264 = vmatpush1.msra.mxu0 %v65
  %1265 = vmatprep.subr.mxu0 0.0
  %1266 = vmatpush1.msra.mxu0 %v66
  %1267 = vmatprep.subr.mxu0 0.0
  %1268 = vmatpush1.msra.mxu0 %v67
  %1269 = vmatprep.subr.mxu0 0.0
  %1270 = vmatpush1.msra.mxu0 0.0
  %1271 = vmatprep.subr.mxu0 0.0
  %1272 = vmatpush1.msra.mxu0 0.0
  %1273 = vmatprep.subr.mxu0 0.0
  %1274 = vmatpush1.msra.mxu0 0.0
  %1275 = vmatprep.subr.mxu0 0.0
  %1276 = vmatpush1.msra.mxu0 0.0
  %1277 = vmatprep.subr.mxu0 0.0
  %1278 = vmatpush1.msra.mxu0 0.0
  %1279 = vmatprep.subr.mxu0 0.0
  %1280 = vmatpush1.msra.mxu0 0.0
  %1281 = vmatprep.subr.mxu0 0.0
  %1282 = vmatpush1.msra.mxu0 0.0
  %1283 = vmatprep.subr.mxu0 0.0
  %1284 = vmatpush1.msra.mxu0 0.0
  %1285 = vmatprep.subr.mxu0 0.0
  %1286 = vmatpush1.msra.mxu0 0.0
  %1287 = vmatprep.subr.mxu0 0.0
  %1288 = vmatpush1.msra.mxu0 0.0
  %1289 = vmatprep.subr.mxu0 0.0
  %1290 = vmatpush1.msra.mxu0 0.0
  %1291 = vmatprep.subr.mxu0 0.0
  %1292 = vmatpush1.msra.mxu0 0.0
  %1293 = vmatprep.subr.mxu0 0.0
  %1294 = vmatpush1.msra.mxu0 0.0
  %1295 = vmatprep.subr.mxu0 0.0
  %1296 = vmatpush1.msra.mxu0 0.0
  %1297 = vmatprep.subr.mxu0 0.0
  %1298 = vmatpush1.msra.mxu0 0.0
  %1299 = vmatprep.subr.mxu0 0.0
  %1300 = vmatpush1.msra.mxu0 0.0
  %1301 = vmatprep.mubr.f32.mxu0 0.0
  %1302 = vmatmul.mubr.f32.gmra.mrb[0].mxu0 %v1160
  %v1303 = vpop.f32.mrb[0].mxu0
  %v1304 = vadd.f32 0.0, %v1303
  %v1305 = vpop.f32.mrb[0].mxu0
  %1306 = vdwg.mxu0
  %1307 = vmatprep.subr.mxu0 0.0
  %1308 = vmatpush1.msra.mxu0 %v36
  %1309 = vmatprep.subr.mxu0 0.0
  %1310 = vmatpush1.msra.mxu0 %v37
  %1311 = vmatprep.subr.mxu0 0.0
  %1312 = vmatpush1.msra.mxu0 %v38
  %1313 = vmatprep.subr.mxu0 0.0
  %1314 = vmatpush1.msra.mxu0 %v39
  %1315 = vmatprep.subr.mxu0 0.0
  %1316 = vmatpush1.msra.mxu0 %v40
  %1317 = vmatprep.subr.mxu0 0.0
  %1318 = vmatpush1.msra.mxu0 %v41
  %1319 = vmatprep.subr.mxu0 0.0
  %1320 = vmatpush1.msra.mxu0 %v42
  %1321 = vmatprep.subr.mxu0 0.0
  %1322 = vmatpush1.msra.mxu0 %v43
  %1323 = vmatprep.subr.mxu0 0.0
  %1324 = vmatpush1.msra.mxu0 %v44
  %1325 = vmatprep.subr.mxu0 0.0
  %1326 = vmatpush1.msra.mxu0 %v45
  %1327 = vmatprep.subr.mxu0 0.0
  %1328 = vmatpush1.msra.mxu0 %v46
  %1329 = vmatprep.subr.mxu0 0.0
  %1330 = vmatpush1.msra.mxu0 %v47
  %1331 = vmatprep.subr.mxu0 0.0
  %1332 = vmatpush1.msra.mxu0 %v48
  %1333 = vmatprep.subr.mxu0 0.0
  %1334 = vmatpush1.msra.mxu0 %v49
  %1335 = vmatprep.subr.mxu0 0.0
  %1336 = vmatpush1.msra.mxu0 %v50
  %1337 = vmatprep.subr.mxu0 0.0
  %1338 = vmatpush1.msra.mxu0 %v51
  %1339 = vmatprep.subr.mxu0 0.0
  %1340 = vmatpush1.msra.mxu0 0.0
  %1341 = vmatprep.subr.mxu0 0.0
  %1342 = vmatpush1.msra.mxu0 0.0
  %1343 = vmatprep.subr.mxu0 0.0
  %1344 = vmatpush1.msra.mxu0 0.0
  %1345 = vmatprep.subr.mxu0 0.0
  %1346 = vmatpush1.msra.mxu0 0.0
  %1347 = vmatprep.subr.mxu0 0.0
  %1348 = vmatpush1.msra.mxu0 0.0
  %1349 = vmatprep.subr.mxu0 0.0
  %1350 = vmatpush1.msra.mxu0 0.0
  %1351 = vmatprep.subr.mxu0 0.0
  %1352 = vmatpush1.msra.mxu0 0.0
  %1353 = vmatprep.subr.mxu0 0.0
  %1354 = vmatpush1.msra.mxu0 0.0
  %1355 = vmatprep.subr.mxu0 0.0
  %1356 = vmatpush1.msra.mxu0 0.0
  %1357 = vmatprep.subr.mxu0 0.0
  %1358 = vmatpush1.msra.mxu0 0.0
  %1359 = vmatprep.subr.mxu0 0.0
  %1360 = vmatpush1.msra.mxu0 0.0
  %1361 = vmatprep.subr.mxu0 0.0
  %1362 = vmatpush1.msra.mxu0 0.0
  %1363 = vmatprep.subr.mxu0 0.0
  %1364 = vmatpush1.msra.mxu0 0.0
  %1365 = vmatprep.subr.mxu0 0.0
  %1366 = vmatpush1.msra.mxu0 0.0
  %1367 = vmatprep.subr.mxu0 0.0
  %1368 = vmatpush1.msra.mxu0 0.0
  %1369 = vmatprep.subr.mxu0 0.0
  %1370 = vmatpush1.msra.mxu0 0.0
  %1371 = vmatprep.mubr.f32.mxu0 0.0
  %1372 = vmatmul.mubr.f32.gmra.mrb[0].mxu0 %v1236
  %v1373 = vpop.f32.mrb[0].mxu0
  %v1374 = vadd.f32 %v1304, %v1373
  %v1375 = vpop.f32.mrb[0].mxu0
  %1376 = vdwg.mxu0
  %v1377 = vadd.f32 %v1374, %v286
  %v1378 = vtanh.pop %v1377
  %s1379 = scalar_lea.vmem %s5, 40
  %1380 = vst [vmem:[%s1379] sm:$0xff] %v1378
  %s1381 = scalar_lea.vmem %s0, 48
  %v1382 = vld [vmem:[%s1381] sm:$0xff]
  %1383 = vmatprep.subr.mxu0 0.0
  %1384 = vmatpush1.msra.mxu0 %v20
  %1385 = vmatprep.subr.mxu0 0.0
  %1386 = vmatpush1.msra.mxu0 %v21
  %1387 = vmatprep.subr.mxu0 0.0
  %1388 = vmatpush1.msra.mxu0 %v22
  %1389 = vmatprep.subr.mxu0 0.0
  %1390 = vmatpush1.msra.mxu0 %v23
  %1391 = vmatprep.subr.mxu0 0.0
  %1392 = vmatpush1.msra.mxu0 %v24
  %1393 = vmatprep.subr.mxu0 0.0
  %1394 = vmatpush1.msra.mxu0 %v25
  %1395 = vmatprep.subr.mxu0 0.0
  %1396 = vmatpush1.msra.mxu0 %v26
  %1397 = vmatprep.subr.mxu0 0.0
  %1398 = vmatpush1.msra.mxu0 %v27
  %1399 = vmatprep.subr.mxu0 0.0
  %1400 = vmatpush1.msra.mxu0 %v28
  %1401 = vmatprep.subr.mxu0 0.0
  %1402 = vmatpush1.msra.mxu0 %v29
  %1403 = vmatprep.subr.mxu0 0.0
  %1404 = vmatpush1.msra.mxu0 %v30
  %1405 = vmatprep.subr.mxu0 0.0
  %1406 = vmatpush1.msra.mxu0 %v31
  %1407 = vmatprep.subr.mxu0 0.0
  %1408 = vmatpush1.msra.mxu0 %v32
  %1409 = vmatprep.subr.mxu0 0.0
  %1410 = vmatpush1.msra.mxu0 %v33
  %1411 = vmatprep.subr.mxu0 0.0
  %1412 = vmatpush1.msra.mxu0 %v34
  %1413 = vmatprep.subr.mxu0 0.0
  %1414 = vmatpush1.msra.mxu0 %v35
  %1415 = vmatprep.subr.mxu0 0.0
  %1416 = vmatpush1.msra.mxu0 0.0
  %1417 = vmatprep.subr.mxu0 0.0
  %1418 = vmatpush1.msra.mxu0 0.0
  %1419 = vmatprep.subr.mxu0 0.0
  %1420 = vmatpush1.msra.mxu0 0.0
  %1421 = vmatprep.subr.mxu0 0.0
  %1422 = vmatpush1.msra.mxu0 0.0
  %1423 = vmatprep.subr.mxu0 0.0
  %1424 = vmatpush1.msra.mxu0 0.0
  %1425 = vmatprep.subr.mxu0 0.0
  %1426 = vmatpush1.msra.mxu0 0.0
  %1427 = vmatprep.subr.mxu0 0.0
  %1428 = vmatpush1.msra.mxu0 0.0
  %1429 = vmatprep.subr.mxu0 0.0
  %1430 = vmatpush1.msra.mxu0 0.0
  %1431 = vmatprep.subr.mxu0 0.0
  %1432 = vmatpush1.msra.mxu0 0.0
  %1433 = vmatprep.subr.mxu0 0.0
  %1434 = vmatpush1.msra.mxu0 0.0
  %1435 = vmatprep.subr.mxu0 0.0
  %1436 = vmatpush1.msra.mxu0 0.0
  %1437 = vmatprep.subr.mxu0 0.0
  %1438 = vmatpush1.msra.mxu0 0.0
  %1439 = vmatprep.subr.mxu0 0.0
  %1440 = vmatpush1.msra.mxu0 0.0
  %1441 = vmatprep.subr.mxu0 0.0
  %1442 = vmatpush1.msra.mxu0 0.0
  %1443 = vmatprep.subr.mxu0 0.0
  %1444 = vmatpush1.msra.mxu0 0.0
  %1445 = vmatprep.subr.mxu0 0.0
  %1446 = vmatpush1.msra.mxu0 0.0
  %1447 = vmatprep.mubr.f32.mxu0 0.0
  %1448 = vmatmul.mubr.f32.gmra.mrb[0].mxu0 %v1236
  %v1449 = vpop.f32.mrb[0].mxu0
  %v1450 = vadd.f32 0.0, %v1449
  %v1451 = vpop.f32.mrb[0].mxu0
  %1452 = vdwg.mxu0
  %v1453 = vadd.f32 %v1382, %v1450
  %v1454 = vtanh.pop %v1453
  %1455 = vmatprep.subr.mxu0 0.0
  %1456 = vmatpush1.msra.mxu0 %v52
  %1457 = vmatprep.subr.mxu0 0.0
  %1458 = vmatpush1.msra.mxu0 %v53
  %1459 = vmatprep.subr.mxu0 0.0
  %1460 = vmatpush1.msra.mxu0 %v54
  %1461 = vmatprep.subr.mxu0 0.0
  %1462 = vmatpush1.msra.mxu0 %v55
  %1463 = vmatprep.subr.mxu0 0.0
  %1464 = vmatpush1.msra.mxu0 %v56
  %1465 = vmatprep.subr.mxu0 0.0
  %1466 = vmatpush1.msra.mxu0 %v57
  %1467 = vmatprep.subr.mxu0 0.0
  %1468 = vmatpush1.msra.mxu0 %v58
  %1469 = vmatprep.subr.mxu0 0.0
  %1470 = vmatpush1.msra.mxu0 %v59
  %1471 = vmatprep.subr.mxu0 0.0
  %1472 = vmatpush1.msra.mxu0 %v60
  %1473 = vmatprep.subr.mxu0 0.0
  %1474 = vmatpush1.msra.mxu0 %v61
  %1475 = vmatprep.subr.mxu0 0.0
  %1476 = vmatpush1.msra.mxu0 %v62
  %1477 = vmatprep.subr.mxu0 0.0
  %1478 = vmatpush1.msra.mxu0 %v63
  %1479 = vmatprep.subr.mxu0 0.0
  %1480 = vmatpush1.msra.mxu0 %v64
  %1481 = vmatprep.subr.mxu0 0.0
  %1482 = vmatpush1.msra.mxu0 %v65
  %1483 = vmatprep.subr.mxu0 0.0
  %1484 = vmatpush1.msra.mxu0 %v66
  %1485 = vmatprep.subr.mxu0 0.0
  %1486 = vmatpush1.msra.mxu0 %v67
  %1487 = vmatprep.subr.mxu0 0.0
  %1488 = vmatpush1.msra.mxu0 0.0
  %1489 = vmatprep.subr.mxu0 0.0
  %1490 = vmatpush1.msra.mxu0 0.0
  %1491 = vmatprep.subr.mxu0 0.0
  %1492 = vmatpush1.msra.mxu0 0.0
  %1493 = vmatprep.subr.mxu0 0.0
  %1494 = vmatpush1.msra.mxu0 0.0
  %1495 = vmatprep.subr.mxu0 0.0
  %1496 = vmatpush1.msra.mxu0 0.0
  %1497 = vmatprep.subr.mxu0 0.0
  %1498 = vmatpush1.msra.mxu0 0.0
  %1499 = vmatprep.subr.mxu0 0.0
  %1500 = vmatpush1.msra.mxu0 0.0
  %1501 = vmatprep.subr.mxu0 0.0
  %1502 = vmatpush1.msra.mxu0 0.0
  %1503 = vmatprep.subr.mxu0 0.0
  %1504 = vmatpush1.msra.mxu0 0.0
  %1505 = vmatprep.subr.mxu0 0.0
  %1506 = vmatpush1.msra.mxu0 0.0
  %1507 = vmatprep.subr.mxu0 0.0
  %1508 = vmatpush1.msra.mxu0 0.0
  %1509 = vmatprep.subr.mxu0 0.0
  %1510 = vmatpush1.msra.mxu0 0.0
  %1511 = vmatprep.subr.mxu0 0.0
  %1512 = vmatpush1.msra.mxu0 0.0
  %1513 = vmatprep.subr.mxu0 0.0
  %1514 = vmatpush1.msra.mxu0 0.0
  %1515 = vmatprep.subr.mxu0 0.0
  %1516 = vmatpush1.msra.mxu0 0.0
  %1517 = vmatprep.subr.mxu0 0.0
  %1518 = vmatpush1.msra.mxu0 0.0
  %1519 = vmatprep.mubr.f32.mxu0 0.0
  %1520 = vmatmul.mubr.f32.gmra.mrb[0].mxu0 %v1378
  %v1521 = vpop.f32.mrb[0].mxu0
  %v1522 = vadd.f32 0.0, %v1521
  %v1523 = vpop.f32.mrb[0].mxu0
  %1524 = vdwg.mxu0
  %1525 = vmatprep.subr.mxu0 0.0
  %1526 = vmatpush1.msra.mxu0 %v36
  %1527 = vmatprep.subr.mxu0 0.0
  %1528 = vmatpush1.msra.mxu0 %v37
  %1529 = vmatprep.subr.mxu0 0.0
  %1530 = vmatpush1.msra.mxu0 %v38
  %1531 = vmatprep.subr.mxu0 0.0
  %1532 = vmatpush1.msra.mxu0 %v39
  %1533 = vmatprep.subr.mxu0 0.0
  %1534 = vmatpush1.msra.mxu0 %v40
  %1535 = vmatprep.subr.mxu0 0.0
  %1536 = vmatpush1.msra.mxu0 %v41
  %1537 = vmatprep.subr.mxu0 0.0
  %1538 = vmatpush1.msra.mxu0 %v42
  %1539 = vmatprep.subr.mxu0 0.0
  %1540 = vmatpush1.msra.mxu0 %v43
  %1541 = vmatprep.subr.mxu0 0.0
  %1542 = vmatpush1.msra.mxu0 %v44
  %1543 = vmatprep.subr.mxu0 0.0
  %1544 = vmatpush1.msra.mxu0 %v45
  %1545 = vmatprep.subr.mxu0 0.0
  %1546 = vmatpush1.msra.mxu0 %v46
  %1547 = vmatprep.subr.mxu0 0.0
  %1548 = vmatpush1.msra.mxu0 %v47
  %1549 = vmatprep.subr.mxu0 0.0
  %1550 = vmatpush1.msra.mxu0 %v48
  %1551 = vmatprep.subr.mxu0 0.0
  %1552 = vmatpush1.msra.mxu0 %v49
  %1553 = vmatprep.subr.mxu0 0.0
  %1554 = vmatpush1.msra.mxu0 %v50
  %1555 = vmatprep.subr.mxu0 0.0
  %1556 = vmatpush1.msra.mxu0 %v51
  %1557 = vmatprep.subr.mxu0 0.0
  %1558 = vmatpush1.msra.mxu0 0.0
  %1559 = vmatprep.subr.mxu0 0.0
  %1560 = vmatpush1.msra.mxu0 0.0
  %1561 = vmatprep.subr.mxu0 0.0
  %1562 = vmatpush1.msra.mxu0 0.0
  %1563 = vmatprep.subr.mxu0 0.0
  %1564 = vmatpush1.msra.mxu0 0.0
  %1565 = vmatprep.subr.mxu0 0.0
  %1566 = vmatpush1.msra.mxu0 0.0
  %1567 = vmatprep.subr.mxu0 0.0
  %1568 = vmatpush1.msra.mxu0 0.0
  %1569 = vmatprep.subr.mxu0 0.0
  %1570 = vmatpush1.msra.mxu0 0.0
  %1571 = vmatprep.subr.mxu0 0.0
  %1572 = vmatpush1.msra.mxu0 0.0
  %1573 = vmatprep.subr.mxu0 0.0
  %1574 = vmatpush1.msra.mxu0 0.0
  %1575 = vmatprep.subr.mxu0 0.0
  %1576 = vmatpush1.msra.mxu0 0.0
  %1577 = vmatprep.subr.mxu0 0.0
  %1578 = vmatpush1.msra.mxu0 0.0
  %1579 = vmatprep.subr.mxu0 0.0
  %1580 = vmatpush1.msra.mxu0 0.0
  %1581 = vmatprep.subr.mxu0 0.0
  %1582 = vmatpush1.msra.mxu0 0.0
  %1583 = vmatprep.subr.mxu0 0.0
  %1584 = vmatpush1.msra.mxu0 0.0
  %1585 = vmatprep.subr.mxu0 0.0
  %1586 = vmatpush1.msra.mxu0 0.0
  %1587 = vmatprep.subr.mxu0 0.0
  %1588 = vmatpush1.msra.mxu0 0.0
  %1589 = vmatprep.mubr.f32.mxu0 0.0
  %1590 = vmatmul.mubr.f32.gmra.mrb[0].mxu0 %v1454
  %v1591 = vpop.f32.mrb[0].mxu0
  %v1592 = vadd.f32 %v1522, %v1591
  %v1593 = vpop.f32.mrb[0].mxu0
  %1594 = vdwg.mxu0
  %v1595 = vadd.f32 %v1592, %v286
  %v1596 = vtanh.pop %v1595
  %s1597 = scalar_lea.vmem %s5, 48
  %1598 = vst [vmem:[%s1597] sm:$0xff] %v1596
  %s1599 = scalar_lea.vmem %s0, 56
  %v1600 = vld [vmem:[%s1599] sm:$0xff]
  %1601 = vmatprep.subr.mxu0 0.0
  %1602 = vmatpush1.msra.mxu0 %v20
  %1603 = vmatprep.subr.mxu0 0.0
  %1604 = vmatpush1.msra.mxu0 %v21
  %1605 = vmatprep.subr.mxu0 0.0
  %1606 = vmatpush1.msra.mxu0 %v22
  %1607 = vmatprep.subr.mxu0 0.0
  %1608 = vmatpush1.msra.mxu0 %v23
  %1609 = vmatprep.subr.mxu0 0.0
  %1610 = vmatpush1.msra.mxu0 %v24
  %1611 = vmatprep.subr.mxu0 0.0
  %1612 = vmatpush1.msra.mxu0 %v25
  %1613 = vmatprep.subr.mxu0 0.0
  %1614 = vmatpush1.msra.mxu0 %v26
  %1615 = vmatprep.subr.mxu0 0.0
  %1616 = vmatpush1.msra.mxu0 %v27
  %1617 = vmatprep.subr.mxu0 0.0
  %1618 = vmatpush1.msra.mxu0 %v28
  %1619 = vmatprep.subr.mxu0 0.0
  %1620 = vmatpush1.msra.mxu0 %v29
  %1621 = vmatprep.subr.mxu0 0.0
  %1622 = vmatpush1.msra.mxu0 %v30
  %1623 = vmatprep.subr.mxu0 0.0
  %1624 = vmatpush1.msra.mxu0 %v31
  %1625 = vmatprep.subr.mxu0 0.0
  %1626 = vmatpush1.msra.mxu0 %v32
  %1627 = vmatprep.subr.mxu0 0.0
  %1628 = vmatpush1.msra.mxu0 %v33
  %1629 = vmatprep.subr.mxu0 0.0
  %1630 = vmatpush1.msra.mxu0 %v34
  %1631 = vmatprep.subr.mxu0 0.0
  %1632 = vmatpush1.msra.mxu0 %v35
  %1633 = vmatprep.subr.mxu0 0.0
  %1634 = vmatpush1.msra.mxu0 0.0
  %1635 = vmatprep.subr.mxu0 0.0
  %1636 = vmatpush1.msra.mxu0 0.0
  %1637 = vmatprep.subr.mxu0 0.0
  %1638 = vmatpush1.msra.mxu0 0.0
  %1639 = vmatprep.subr.mxu0 0.0
  %1640 = vmatpush1.msra.mxu0 0.0
  %1641 = vmatprep.subr.mxu0 0.0
  %1642 = vmatpush1.msra.mxu0 0.0
  %1643 = vmatprep.subr.mxu0 0.0
  %1644 = vmatpush1.msra.mxu0 0.0
  %1645 = vmatprep.subr.mxu0 0.0
  %1646 = vmatpush1.msra.mxu0 0.0
  %1647 = vmatprep.subr.mxu0 0.0
  %1648 = vmatpush1.msra.mxu0 0.0
  %1649 = vmatprep.subr.mxu0 0.0
  %1650 = vmatpush1.msra.mxu0 0.0
  %1651 = vmatprep.subr.mxu0 0.0
  %1652 = vmatpush1.msra.mxu0 0.0
  %1653 = vmatprep.subr.mxu0 0.0
  %1654 = vmatpush1.msra.mxu0 0.0
  %1655 = vmatprep.subr.mxu0 0.0
  %1656 = vmatpush1.msra.mxu0 0.0
  %1657 = vmatprep.subr.mxu0 0.0
  %1658 = vmatpush1.msra.mxu0 0.0
  %1659 = vmatprep.subr.mxu0 0.0
  %1660 = vmatpush1.msra.mxu0 0.0
  %1661 = vmatprep.subr.mxu0 0.0
  %1662 = vmatpush1.msra.mxu0 0.0
  %1663 = vmatprep.subr.mxu0 0.0
  %1664 = vmatpush1.msra.mxu0 0.0
  %1665 = vmatprep.mubr.f32.mxu0 0.0
  %1666 = vmatmul.mubr.f32.gmra.mrb[0].mxu0 %v1454
  %v1667 = vpop.f32.mrb[0].mxu0
  %v1668 = vadd.f32 0.0, %v1667
  %v1669 = vpop.f32.mrb[0].mxu0
  %1670 = vdwg.mxu0
  %v1671 = vadd.f32 %v1600, %v1668
  %v1672 = vtanh.pop %v1671
  %1673 = vmatprep.subr.mxu0 0.0
  %1674 = vmatpush1.msra.mxu0 %v52
  %1675 = vmatprep.subr.mxu0 0.0
  %1676 = vmatpush1.msra.mxu0 %v53
  %1677 = vmatprep.subr.mxu0 0.0
  %1678 = vmatpush1.msra.mxu0 %v54
  %1679 = vmatprep.subr.mxu0 0.0
  %1680 = vmatpush1.msra.mxu0 %v55
  %1681 = vmatprep.subr.mxu0 0.0
  %1682 = vmatpush1.msra.mxu0 %v56
  %1683 = vmatprep.subr.mxu0 0.0
  %1684 = vmatpush1.msra.mxu0 %v57
  %1685 = vmatprep.subr.mxu0 0.0
  %1686 = vmatpush1.msra.mxu0 %v58
  %1687 = vmatprep.subr.mxu0 0.0
  %1688 = vmatpush1.msra.mxu0 %v59
  %1689 = vmatprep.subr.mxu0 0.0
  %1690 = vmatpush1.msra.mxu0 %v60
  %1691 = vmatprep.subr.mxu0 0.0
  %1692 = vmatpush1.msra.mxu0 %v61
  %1693 = vmatprep.subr.mxu0 0.0
  %1694 = vmatpush1.msra.mxu0 %v62
  %1695 = vmatprep.subr.mxu0 0.0
  %1696 = vmatpush1.msra.mxu0 %v63
  %1697 = vmatprep.subr.mxu0 0.0
  %1698 = vmatpush1.msra.mxu0 %v64
  %1699 = vmatprep.subr.mxu0 0.0
  %1700 = vmatpush1.msra.mxu0 %v65
  %1701 = vmatprep.subr.mxu0 0.0
  %1702 = vmatpush1.msra.mxu0 %v66
  %1703 = vmatprep.subr.mxu0 0.0
  %1704 = vmatpush1.msra.mxu0 %v67
  %1705 = vmatprep.subr.mxu0 0.0
  %1706 = vmatpush1.msra.mxu0 0.0
  %1707 = vmatprep.subr.mxu0 0.0
  %1708 = vmatpush1.msra.mxu0 0.0
  %1709 = vmatprep.subr.mxu0 0.0
  %1710 = vmatpush1.msra.mxu0 0.0
  %1711 = vmatprep.subr.mxu0 0.0
  %1712 = vmatpush1.msra.mxu0 0.0
  %1713 = vmatprep.subr.mxu0 0.0
  %1714 = vmatpush1.msra.mxu0 0.0
  %1715 = vmatprep.subr.mxu0 0.0
  %1716 = vmatpush1.msra.mxu0 0.0
  %1717 = vmatprep.subr.mxu0 0.0
  %1718 = vmatpush1.msra.mxu0 0.0
  %1719 = vmatprep.subr.mxu0 0.0
  %1720 = vmatpush1.msra.mxu0 0.0
  %1721 = vmatprep.subr.mxu0 0.0
  %1722 = vmatpush1.msra.mxu0 0.0
  %1723 = vmatprep.subr.mxu0 0.0
  %1724 = vmatpush1.msra.mxu0 0.0
  %1725 = vmatprep.subr.mxu0 0.0
  %1726 = vmatpush1.msra.mxu0 0.0
  %1727 = vmatprep.subr.mxu0 0.0
  %1728 = vmatpush1.msra.mxu0 0.0
  %1729 = vmatprep.subr.mxu0 0.0
  %1730 = vmatpush1.msra.mxu0 0.0
  %1731 = vmatprep.subr.mxu0 0.0
  %1732 = vmatpush1.msra.mxu0 0.0
  %1733 = vmatprep.subr.mxu0 0.0
  %1734 = vmatpush1.msra.mxu0 0.0
  %1735 = vmatprep.subr.mxu0 0.0
  %1736 = vmatpush1.msra.mxu0 0.0
  %1737 = vmatprep.mubr.f32.mxu0 0.0
  %1738 = vmatmul.mubr.f32.gmra.mrb[0].mxu0 %v1596
  %v1739 = vpop.f32.mrb[0].mxu0
  %v1740 = vadd.f32 0.0, %v1739
  %v1741 = vpop.f32.mrb[0].mxu0
  %1742 = vdwg.mxu0
  %1743 = vmatprep.subr.mxu0 0.0
  %1744 = vmatpush1.msra.mxu0 %v36
  %1745 = vmatprep.subr.mxu0 0.0
  %1746 = vmatpush1.msra.mxu0 %v37
  %1747 = vmatprep.subr.mxu0 0.0
  %1748 = vmatpush1.msra.mxu0 %v38
  %1749 = vmatprep.subr.mxu0 0.0
  %1750 = vmatpush1.msra.mxu0 %v39
  %1751 = vmatprep.subr.mxu0 0.0
  %1752 = vmatpush1.msra.mxu0 %v40
  %1753 = vmatprep.subr.mxu0 0.0
  %1754 = vmatpush1.msra.mxu0 %v41
  %1755 = vmatprep.subr.mxu0 0.0
  %1756 = vmatpush1.msra.mxu0 %v42
  %1757 = vmatprep.subr.mxu0 0.0
  %1758 = vmatpush1.msra.mxu0 %v43
  %1759 = vmatprep.subr.mxu0 0.0
  %1760 = vmatpush1.msra.mxu0 %v44
  %1761 = vmatprep.subr.mxu0 0.0
  %1762 = vmatpush1.msra.mxu0 %v45
  %1763 = vmatprep.subr.mxu0 0.0
  %1764 = vmatpush1.msra.mxu0 %v46
  %1765 = vmatprep.subr.mxu0 0.0
  %1766 = vmatpush1.msra.mxu0 %v47
  %1767 = vmatprep.subr.mxu0 0.0
  %1768 = vmatpush1.msra.mxu0 %v48
  %1769 = vmatprep.subr.mxu0 0.0
  %1770 = vmatpush1.msra.mxu0 %v49
  %1771 = vmatprep.subr.mxu0 0.0
  %1772 = vmatpush1.msra.mxu0 %v50
  %1773 = vmatprep.subr.mxu0 0.0
  %1774 = vmatpush1.msra.mxu0 %v51
  %1775 = vmatprep.subr.mxu0 0.0
  %1776 = vmatpush1.msra.mxu0 0.0
  %1777 = vmatprep.subr.mxu0 0.0
  %1778 = vmatpush1.msra.mxu0 0.0
  %1779 = vmatprep.subr.mxu0 0.0
  %1780 = vmatpush1.msra.mxu0 0.0
  %1781 = vmatprep.subr.mxu0 0.0
  %1782 = vmatpush1.msra.mxu0 0.0
  %1783 = vmatprep.subr.mxu0 0.0
  %1784 = vmatpush1.msra.mxu0 0.0
  %1785 = vmatprep.subr.mxu0 0.0
  %1786 = vmatpush1.msra.mxu0 0.0
  %1787 = vmatprep.subr.mxu0 0.0
  %1788 = vmatpush1.msra.mxu0 0.0
  %1789 = vmatprep.subr.mxu0 0.0
  %1790 = vmatpush1.msra.mxu0 0.0
  %1791 = vmatprep.subr.mxu0 0.0
  %1792 = vmatpush1.msra.mxu0 0.0
  %1793 = vmatprep.subr.mxu0 0.0
  %1794 = vmatpush1.msra.mxu0 0.0
  %1795 = vmatprep.subr.mxu0 0.0
  %1796 = vmatpush1.msra.mxu0 0.0
  %1797 = vmatprep.subr.mxu0 0.0
  %1798 = vmatpush1.msra.mxu0 0.0
  %1799 = vmatprep.subr.mxu0 0.0
  %1800 = vmatpush1.msra.mxu0 0.0
  %1801 = vmatprep.subr.mxu0 0.0
  %1802 = vmatpush1.msra.mxu0 0.0
  %1803 = vmatprep.subr.mxu0 0.0
  %1804 = vmatpush1.msra.mxu0 0.0
  %1805 = vmatprep.subr.mxu0 0.0
  %1806 = vmatpush1.msra.mxu0 0.0
  %1807 = vmatprep.mubr.f32.mxu0 0.0
  %1808 = vmatmul.mubr.f32.gmra.mrb[0].mxu0 %v1672
  %v1809 = vpop.f32.mrb[0].mxu0
  %v1810 = vadd.f32 %v1740, %v1809
  %v1811 = vpop.f32.mrb[0].mxu0
  %1812 = vdwg.mxu0
  %v1813 = vadd.f32 %v1810, %v286
  %v1814 = vtanh.pop %v1813
  %s1815 = scalar_lea.vmem %s5, 56
  %1816 = vst [vmem:[%s1815] sm:$0xff] %v1814
  // Predicated region
  $region22: #{rnn1_forward.1} parent=0 // pred_check
    _
  $region23: #{rnn1_forward.1} parent=0 // pred_check_branch
    %1818 = sbr.rel (0) target = $region25
  $region24: #{rnn1_forward.1} parent=0 // pred_region
    _
  $region25: #{rnn1_forward.1} parent=0 // pred_fallthru
    _
  // Predicated region
  $region26: #{rnn1_forward.1} parent=0 // pred_check
    _
  $region27: #{rnn1_forward.1} parent=0 // pred_check_branch
    %1820 = sbr.rel (0) target = $region29
  $region28: #{rnn1_forward.1} parent=0 // pred_region
    _
  $region29: #{rnn1_forward.1} parent=0 // pred_fallthru
    _

</llo_original>
